<compile_context>
chip_gen: v6e
topology: v6e:2x2x1
jax: 0.10.0
libtpu: 0.0.40
codegen_flags: <defaults>
</compile_context>

<pallas_src>
import functools

import numpy as np
import jax
import jax.numpy as jnp
from jax.experimental import pallas as pl
from jax.experimental.pallas import tpu as pltpu


def _vmem():
    # whole-array blocks resident in VMEM (all shapes here are KB-sized)
    return pl.BlockSpec(memory_space=pltpu.MemorySpace.VMEM)


# --------------------------------------------------------------------------
# Fused kernel: GATConv+ReLU (heads=H) -> GATConv+ReLU (heads=1)
#               -> global_mean_pool -> Linear -> log_softmax
# --------------------------------------------------------------------------
def propose_tf_kernel(x_ref, w1_ref, wa1_ref, b1_ref,
                      w2_ref, wa2_ref, b2_ref,
                      mask_ref, bt_ref, lw_ref, lb_ref,
                      o_ref, *, heads1, heads2, hidden,
                      negative_slope=0.2):
    mask_add = mask_ref[...]                # [N, N]: 0 where edge, -1e30 elsewhere

    def gat_relu(x, w, wa, bias, heads, d):
        # feature transform for all heads: one MXU matmul
        xp = jnp.dot(x, w, preferred_element_type=jnp.float32)       # [N, H*D]
        # folded attention projections: columns = [dst half | src half]
        s = jnp.dot(x, wa, preferred_element_type=jnp.float32)       # [N, 2H]
        sT = s.T                                                      # [2H, N]
        s_dst = sT[:heads][:, :, None]                                # [H, N, 1]
        s_src = sT[heads:][:, None, :]                                # [H, 1, N]

        # batched (all heads at once) masked edge softmax over sources j
        e = s_dst + s_src                                             # [H, N, N]
        e = jnp.where(e >= 0, e, negative_slope * e)                  # leaky_relu
        e = e + mask_add[None, :, :]
        e = e - jnp.max(e, axis=-1, keepdims=True)
        p = jnp.exp(e)                                                # masked -> 0
        inv = pl.reciprocal(jnp.sum(p, axis=-1, keepdims=True), approx=True)
        alpha = p * inv                                               # [H, N, N]
        # TODO(synk): GATConv attention dropout (p=0.6) only applies in training.

        # per-head aggregation on the (otherwise idle) MXU, then a single
        # lane-dense full-width bias-add + ReLU + return
        outs = [jnp.dot(alpha[h], xp[:, h * d:(h + 1) * d],
                        preferred_element_type=jnp.float32)
                for h in range(heads)]
        out = outs[0] if heads == 1 else jnp.concatenate(outs, axis=1)
        return jnp.maximum(out + bias, 0.0)                           # [N, H*D]

    h1 = gat_relu(x_ref[...], w1_ref[...], wa1_ref[...], b1_ref[...],
                  heads1, hidden)
    h2 = gat_relu(h1, w2_ref[...], wa2_ref[...], b2_ref[...],
                  heads2, hidden)

    # global_mean_pool (onehot passed pre-transposed as [G, N])
    bt = bt_ref[...]
    pooled_sum = jnp.dot(bt, h2, preferred_element_type=jnp.float32)  # [G, D]
    count = jnp.sum(bt, axis=1, keepdims=True)                        # [G, 1]
    pooled = pooled_sum / jnp.maximum(count, 1.0)                     # exact divide

    # lin2 + log_softmax
    logits = jnp.dot(pooled, lw_ref[...],
                     preferred_element_type=jnp.float32) + lb_ref[...]  # [G, C]
    z = logits - jnp.max(logits, axis=-1, keepdims=True)
    lse = jnp.log(jnp.sum(jnp.exp(z), axis=-1, keepdims=True))
    o_ref[...] = z - lse


# --------------------------------------------------------------------------
# Wrapper: one-time parameter folds + layout plumbing, then one pallas_call.
# --------------------------------------------------------------------------
def _fold_attention(w, a_src, a_dst, heads, d):
    # wa[:, h]       = w[:, h*d:(h+1)*d] @ a_dst[h]   (dst half)
    # wa[:, H + h]   = w[:, h*d:(h+1)*d] @ a_src[h]   (src half)
    w3 = w.reshape(w.shape[0], heads, d)
    wa_dst = jnp.einsum('fhd,hd->fh', w3, a_dst)
    wa_src = jnp.einsum('fhd,hd->fh', w3, a_src)
    return jnp.concatenate([wa_dst, wa_src], axis=1)                  # [Fin, 2H]


def propose_tf_forward(params, x, adj, onehot, *, heads, hidden):
    g = onehot.shape[1]
    c = params["lin2_w"].shape[1]

    wa1 = _fold_attention(params["w1"], params["a_src1"], params["a_dst1"],
                          heads, hidden)
    wa2 = _fold_attention(params["w2"], params["a_src2"], params["a_dst2"],
                          1, hidden)
    # additive attention mask, precomputed once (no in-kernel compare/select)
    mask_add = jnp.where(adj > 0, 0.0, -1e30).astype(jnp.float32)
    onehot_t = onehot.T                                               # [G, N]

    kernel = functools.partial(propose_tf_kernel,
                               heads1=heads, heads2=1, hidden=hidden)
    # TODO(synk): for large N, tile the dst rows of mask_add with a grid axis
    # (dimension_semantics=("parallel",)) and set vmem_limit_bytes; at these
    # sizes whole-array VMEM residency with no grid is optimal.
    return pl.pallas_call(
        kernel,
        out_shape=jax.ShapeDtypeStruct((g, c), jnp.float32),
        in_specs=[_vmem()] * 11,
        out_specs=_vmem(),
    )(x, params["w1"], wa1, params["b1"],
      params["w2"], wa2, params["b2"],
      mask_add, onehot_t, params["lin2_w"], params["lin2_b"])


if __name__ == "__main__":
    num_features, hidden, heads, num_classes = 16, 32, 8, 4
    nodes_per_graph, num_graphs = 8, 2
    N = nodes_per_graph * num_graphs

    key = jax.random.PRNGKey(0)
    ks = jax.random.split(key, 12)

    # node features
    x = jax.random.normal(ks[0], (N, num_features), jnp.float32)

    # ring graph inside each component (both directions) + self loops
    A = np.zeros((N, N), np.float32)
    for gidx in range(num_graphs):
        base = gidx * nodes_per_graph
        for i in range(nodes_per_graph):
            j = (i + 1) % nodes_per_graph
            A[base + i, base + j] = 1.0   # edge j -> i
            A[base + j, base + i] = 1.0
    np.fill_diagonal(A, 1.0)              # GATConv add_self_loops=True
    adj = jnp.asarray(A)

    batch = np.repeat(np.arange(num_graphs), nodes_per_graph)
    onehot = jnp.asarray(np.eye(num_graphs, dtype=np.float32)[batch])  # [N, G]

    def init(k, shape, scale=0.1):
        return scale * jax.random.normal(k, shape, jnp.float32)

    params = {
        # conv1 = GATConv(num_features, hidden, heads=8)
        "w1": init(ks[1], (num_features, heads * hidden)),
        "a_src1": init(ks[2], (heads, hidden)),
        "a_dst1": init(ks[3], (heads, hidden)),
        "b1": init(ks[4], (1, heads * hidden)),
        # conv2 = GATConv(hidden * heads, hidden, heads=1)
        "w2": init(ks[5], (heads * hidden, hidden)),
        "a_src2": init(ks[6], (1, hidden)),
        "a_dst2": init(ks[7], (1, hidden)),
        "b2": init(ks[8], (1, hidden)),
        # lin2 = Linear(hidden, num_classes)
        "lin2_w": init(ks[10], (hidden, num_classes)),
        "lin2_b": init(ks[11], (1, num_classes)),
    }

    out = propose_tf_forward(params, x, adj, onehot, heads=heads, hidden=hidden)
    out = jax.block_until_ready(out)

    assert out.shape == (num_graphs, num_classes), out.shape
    assert bool(jnp.all(jnp.isfinite(out)))
    # rows of log_softmax must exp-sum to 1
    assert bool(jnp.allclose(jnp.sum(jnp.exp(out), axis=-1), 1.0, atol=1e-4))
    print("KERNEL_OK")
</pallas_src>

<mosaic_0001>
module attributes {stable_mosaic.version = 11 : i64} {
  func.func @propose_tf_kernel(%arg0: memref<16x16xf32, #tpu.memory_space<vmem>>, %arg1: memref<16x256xf32, #tpu.memory_space<vmem>>, %arg2: memref<16x16xf32, #tpu.memory_space<vmem>>, %arg3: memref<1x256xf32, #tpu.memory_space<vmem>>, %arg4: memref<256x32xf32, #tpu.memory_space<vmem>>, %arg5: memref<256x2xf32, #tpu.memory_space<vmem>>, %arg6: memref<1x32xf32, #tpu.memory_space<vmem>>, %arg7: memref<16x16xf32, #tpu.memory_space<vmem>>, %arg8: memref<2x16xf32, #tpu.memory_space<vmem>>, %arg9: memref<32x4xf32, #tpu.memory_space<vmem>>, %arg10: memref<1x4xf32, #tpu.memory_space<vmem>>, %arg11: memref<2x4xf32, #tpu.memory_space<vmem>>) attributes {dimension_semantics = [], scalar_prefetch = 0 : i64, scratch_operands = 0 : i64, tpu.core_type = #tpu.core_type<tc>} {
    %c0 = arith.constant 0 : index
    %c0_0 = arith.constant 0 : index
    %0 = vector.load %arg7[%c0, %c0_0] : memref<16x16xf32, #tpu.memory_space<vmem>>, vector<16x16xf32>
    %c0_1 = arith.constant 0 : index
    %c0_2 = arith.constant 0 : index
    %1 = vector.load %arg0[%c0_1, %c0_2] : memref<16x16xf32, #tpu.memory_space<vmem>>, vector<16x16xf32>
    %c0_3 = arith.constant 0 : index
    %c0_4 = arith.constant 0 : index
    %2 = vector.load %arg1[%c0_3, %c0_4] : memref<16x256xf32, #tpu.memory_space<vmem>>, vector<16x256xf32>
    %c0_5 = arith.constant 0 : index
    %c0_6 = arith.constant 0 : index
    %3 = vector.load %arg2[%c0_5, %c0_6] : memref<16x16xf32, #tpu.memory_space<vmem>>, vector<16x16xf32>
    %c0_7 = arith.constant 0 : index
    %c0_8 = arith.constant 0 : index
    %4 = vector.load %arg3[%c0_7, %c0_8] : memref<1x256xf32, #tpu.memory_space<vmem>>, vector<1x256xf32>
    %cst = arith.constant dense<0.000000e+00> : vector<16x256xf32>
    %5 = tpu.matmul %1, %2, %cst {dimension_numbers = #tpu.dot_dimension_numbers<[1], [0], [0], [1], [0, 0, 1, 1], [], []>} : vector<16x16xf32>, vector<16x256xf32>, vector<16x256xf32> -> vector<16x256xf32>
    %cst_9 = arith.constant dense<0.000000e+00> : vector<16x16xf32>
    %6 = tpu.matmul %1, %3, %cst_9 {dimension_numbers = #tpu.dot_dimension_numbers<[1], [0], [0], [1], [0, 0, 1, 1], [], []>} : vector<16x16xf32>, vector<16x16xf32>, vector<16x16xf32> -> vector<16x16xf32>
    %7 = tpu.transpose %6, [1, 0] : vector<16x16xf32> -> vector<16x16xf32>
    %8 = vector.extract_strided_slice %7 {offsets = [0, 0], sizes = [8, 16], strides = [1, 1]} : vector<16x16xf32> to vector<8x16xf32>
    %9 = vector.shape_cast %8 : vector<8x16xf32> to vector<8x16x1xf32>
    %10 = vector.extract_strided_slice %7 {offsets = [8, 0], sizes = [8, 16], strides = [1, 1]} : vector<16x16xf32> to vector<8x16xf32>
    %11 = vector.shape_cast %10 : vector<8x16xf32> to vector<8x1x16xf32>
    %12 = vector.broadcast %9 : vector<8x16x1xf32> to vector<8x16x16xf32>
    %13 = vector.broadcast %11 : vector<8x1x16xf32> to vector<8x16x16xf32>
    %14 = arith.addf %12, %13 : vector<8x16x16xf32>
    %cst_10 = arith.constant 0.000000e+00 : f32
    %15 = vector.broadcast %cst_10 : f32 to vector<8x16x16xf32>
    %16 = arith.cmpf oge, %14, %15 : vector<8x16x16xf32>
    %cst_11 = arith.constant 2.000000e-01 : f32
    %17 = vector.broadcast %cst_11 : f32 to vector<8x16x16xf32>
    %18 = arith.mulf %17, %14 : vector<8x16x16xf32>
    %19 = arith.select %16, %14, %18 : vector<8x16x16xi1>, vector<8x16x16xf32>
    %20 = vector.shape_cast %0 : vector<16x16xf32> to vector<1x16x16xf32>
    %21 = vector.broadcast %20 : vector<1x16x16xf32> to vector<8x16x16xf32>
    %22 = arith.addf %19, %21 : vector<8x16x16xf32>
    %cst_12 = arith.constant dense<0xFF800000> : vector<8x16xf32>
    %23 = vector.multi_reduction <maximumf>, %22, %cst_12 [2] : vector<8x16x16xf32> to vector<8x16xf32>
    %24 = vector.shape_cast %23 : vector<8x16xf32> to vector<8x16x1xf32>
    %25 = vector.broadcast %24 : vector<8x16x1xf32> to vector<8x16x16xf32>
    %26 = arith.subf %22, %25 : vector<8x16x16xf32>
    %27 = math.exp %26 : vector<8x16x16xf32>
    %cst_13 = arith.constant dense<0.000000e+00> : vector<8x16xf32>
    %28 = vector.multi_reduction <add>, %27, %cst_13 [2] : vector<8x16x16xf32> to vector<8x16xf32>
    %29 = vector.shape_cast %28 : vector<8x16xf32> to vector<8x16x1xf32>
    %30 = tpu.reciprocal %29 {approx = true} : vector<8x16x1xf32> -> vector<8x16x1xf32>
    %31 = vector.broadcast %30 : vector<8x16x1xf32> to vector<8x16x16xf32>
    %32 = arith.mulf %27, %31 : vector<8x16x16xf32>
    %33 = vector.extract_strided_slice %32 {offsets = [0, 0, 0], sizes = [1, 16, 16], strides = [1, 1, 1]} : vector<8x16x16xf32> to vector<1x16x16xf32>
    %34 = vector.shape_cast %33 : vector<1x16x16xf32> to vector<16x16xf32>
    %35 = vector.extract_strided_slice %5 {offsets = [0, 0], sizes = [16, 32], strides = [1, 1]} : vector<16x256xf32> to vector<16x32xf32>
    %cst_14 = arith.constant dense<0.000000e+00> : vector<16x32xf32>
    %36 = tpu.matmul %34, %35, %cst_14 {dimension_numbers = #tpu.dot_dimension_numbers<[1], [0], [0], [1], [0, 0, 1, 1], [], []>} : vector<16x16xf32>, vector<16x32xf32>, vector<16x32xf32> -> vector<16x32xf32>
    %37 = vector.extract_strided_slice %32 {offsets = [1, 0, 0], sizes = [1, 16, 16], strides = [1, 1, 1]} : vector<8x16x16xf32> to vector<1x16x16xf32>
    %38 = vector.shape_cast %37 : vector<1x16x16xf32> to vector<16x16xf32>
    %39 = vector.extract_strided_slice %5 {offsets = [0, 32], sizes = [16, 32], strides = [1, 1]} : vector<16x256xf32> to vector<16x32xf32>
    %cst_15 = arith.constant dense<0.000000e+00> : vector<16x32xf32>
    %40 = tpu.matmul %38, %39, %cst_15 {dimension_numbers = #tpu.dot_dimension_numbers<[1], [0], [0], [1], [0, 0, 1, 1], [], []>} : vector<16x16xf32>, vector<16x32xf32>, vector<16x32xf32> -> vector<16x32xf32>
    %41 = vector.extract_strided_slice %32 {offsets = [2, 0, 0], sizes = [1, 16, 16], strides = [1, 1, 1]} : vector<8x16x16xf32> to vector<1x16x16xf32>
    %42 = vector.shape_cast %41 : vector<1x16x16xf32> to vector<16x16xf32>
    %43 = vector.extract_strided_slice %5 {offsets = [0, 64], sizes = [16, 32], strides = [1, 1]} : vector<16x256xf32> to vector<16x32xf32>
    %cst_16 = arith.constant dense<0.000000e+00> : vector<16x32xf32>
    %44 = tpu.matmul %42, %43, %cst_16 {dimension_numbers = #tpu.dot_dimension_numbers<[1], [0], [0], [1], [0, 0, 1, 1], [], []>} : vector<16x16xf32>, vector<16x32xf32>, vector<16x32xf32> -> vector<16x32xf32>
    %45 = vector.extract_strided_slice %32 {offsets = [3, 0, 0], sizes = [1, 16, 16], strides = [1, 1, 1]} : vector<8x16x16xf32> to vector<1x16x16xf32>
    %46 = vector.shape_cast %45 : vector<1x16x16xf32> to vector<16x16xf32>
    %47 = vector.extract_strided_slice %5 {offsets = [0, 96], sizes = [16, 32], strides = [1, 1]} : vector<16x256xf32> to vector<16x32xf32>
    %cst_17 = arith.constant dense<0.000000e+00> : vector<16x32xf32>
    %48 = tpu.matmul %46, %47, %cst_17 {dimension_numbers = #tpu.dot_dimension_numbers<[1], [0], [0], [1], [0, 0, 1, 1], [], []>} : vector<16x16xf32>, vector<16x32xf32>, vector<16x32xf32> -> vector<16x32xf32>
    %49 = vector.extract_strided_slice %32 {offsets = [4, 0, 0], sizes = [1, 16, 16], strides = [1, 1, 1]} : vector<8x16x16xf32> to vector<1x16x16xf32>
    %50 = vector.shape_cast %49 : vector<1x16x16xf32> to vector<16x16xf32>
    %51 = vector.extract_strided_slice %5 {offsets = [0, 128], sizes = [16, 32], strides = [1, 1]} : vector<16x256xf32> to vector<16x32xf32>
    %cst_18 = arith.constant dense<0.000000e+00> : vector<16x32xf32>
    %52 = tpu.matmul %50, %51, %cst_18 {dimension_numbers = #tpu.dot_dimension_numbers<[1], [0], [0], [1], [0, 0, 1, 1], [], []>} : vector<16x16xf32>, vector<16x32xf32>, vector<16x32xf32> -> vector<16x32xf32>
    %53 = vector.extract_strided_slice %32 {offsets = [5, 0, 0], sizes = [1, 16, 16], strides = [1, 1, 1]} : vector<8x16x16xf32> to vector<1x16x16xf32>
    %54 = vector.shape_cast %53 : vector<1x16x16xf32> to vector<16x16xf32>
    %55 = vector.extract_strided_slice %5 {offsets = [0, 160], sizes = [16, 32], strides = [1, 1]} : vector<16x256xf32> to vector<16x32xf32>
    %cst_19 = arith.constant dense<0.000000e+00> : vector<16x32xf32>
    %56 = tpu.matmul %54, %55, %cst_19 {dimension_numbers = #tpu.dot_dimension_numbers<[1], [0], [0], [1], [0, 0, 1, 1], [], []>} : vector<16x16xf32>, vector<16x32xf32>, vector<16x32xf32> -> vector<16x32xf32>
    %57 = vector.extract_strided_slice %32 {offsets = [6, 0, 0], sizes = [1, 16, 16], strides = [1, 1, 1]} : vector<8x16x16xf32> to vector<1x16x16xf32>
    %58 = vector.shape_cast %57 : vector<1x16x16xf32> to vector<16x16xf32>
    %59 = vector.extract_strided_slice %5 {offsets = [0, 192], sizes = [16, 32], strides = [1, 1]} : vector<16x256xf32> to vector<16x32xf32>
    %cst_20 = arith.constant dense<0.000000e+00> : vector<16x32xf32>
    %60 = tpu.matmul %58, %59, %cst_20 {dimension_numbers = #tpu.dot_dimension_numbers<[1], [0], [0], [1], [0, 0, 1, 1], [], []>} : vector<16x16xf32>, vector<16x32xf32>, vector<16x32xf32> -> vector<16x32xf32>
    %61 = vector.extract_strided_slice %32 {offsets = [7, 0, 0], sizes = [1, 16, 16], strides = [1, 1, 1]} : vector<8x16x16xf32> to vector<1x16x16xf32>
    %62 = vector.shape_cast %61 : vector<1x16x16xf32> to vector<16x16xf32>
    %63 = vector.extract_strided_slice %5 {offsets = [0, 224], sizes = [16, 32], strides = [1, 1]} : vector<16x256xf32> to vector<16x32xf32>
    %cst_21 = arith.constant dense<0.000000e+00> : vector<16x32xf32>
    %64 = tpu.matmul %62, %63, %cst_21 {dimension_numbers = #tpu.dot_dimension_numbers<[1], [0], [0], [1], [0, 0, 1, 1], [], []>} : vector<16x16xf32>, vector<16x32xf32>, vector<16x32xf32> -> vector<16x32xf32>
    %65 = tpu.concatenate %36, %40, %44, %48, %52, %56, %60, %64 in 1 : vector<16x32xf32>, vector<16x32xf32>, vector<16x32xf32>, vector<16x32xf32>, vector<16x32xf32>, vector<16x32xf32>, vector<16x32xf32>, vector<16x32xf32> -> vector<16x256xf32>
    %66 = vector.broadcast %4 : vector<1x256xf32> to vector<16x256xf32>
    %67 = arith.addf %65, %66 : vector<16x256xf32>
    %cst_22 = arith.constant 0.000000e+00 : f32
    %68 = vector.broadcast %cst_22 : f32 to vector<16x256xf32>
    %69 = arith.maximumf %67, %68 : vector<16x256xf32>
    %c0_23 = arith.constant 0 : index
    %c0_24 = arith.constant 0 : index
    %70 = vector.load %arg4[%c0_23, %c0_24] : memref<256x32xf32, #tpu.memory_space<vmem>>, vector<256x32xf32>
    %c0_25 = arith.constant 0 : index
    %c0_26 = arith.constant 0 : index
    %71 = vector.load %arg5[%c0_25, %c0_26] : memref<256x2xf32, #tpu.memory_space<vmem>>, vector<256x2xf32>
    %c0_27 = arith.constant 0 : index
    %c0_28 = arith.constant 0 : index
    %72 = vector.load %arg6[%c0_27, %c0_28] : memref<1x32xf32, #tpu.memory_space<vmem>>, vector<1x32xf32>
    %cst_29 = arith.constant dense<0.000000e+00> : vector<16x32xf32>
    %73 = tpu.matmul %69, %70, %cst_29 {dimension_numbers = #tpu.dot_dimension_numbers<[1], [0], [0], [1], [0, 0, 1, 1], [], []>} : vector<16x256xf32>, vector<256x32xf32>, vector<16x32xf32> -> vector<16x32xf32>
    %cst_30 = arith.constant dense<0.000000e+00> : vector<16x2xf32>
    %74 = tpu.matmul %69, %71, %cst_30 {dimension_numbers = #tpu.dot_dimension_numbers<[1], [0], [0], [1], [0, 0, 1, 1], [], []>} : vector<16x256xf32>, vector<256x2xf32>, vector<16x2xf32> -> vector<16x2xf32>
    %75 = tpu.transpose %74, [1, 0] : vector<16x2xf32> -> vector<2x16xf32>
    %76 = vector.extract_strided_slice %75 {offsets = [0, 0], sizes = [1, 16], strides = [1, 1]} : vector<2x16xf32> to vector<1x16xf32>
    %77 = vector.shape_cast %76 : vector<1x16xf32> to vector<1x16x1xf32>
    %78 = vector.extract_strided_slice %75 {offsets = [1, 0], sizes = [1, 16], strides = [1, 1]} : vector<2x16xf32> to vector<1x16xf32>
    %79 = vector.shape_cast %78 : vector<1x16xf32> to vector<1x1x16xf32>
    %80 = vector.broadcast %77 : vector<1x16x1xf32> to vector<1x16x16xf32>
    %81 = vector.broadcast %79 : vector<1x1x16xf32> to vector<1x16x16xf32>
    %82 = arith.addf %80, %81 : vector<1x16x16xf32>
    %cst_31 = arith.constant 0.000000e+00 : f32
    %83 = vector.broadcast %cst_31 : f32 to vector<1x16x16xf32>
    %84 = arith.cmpf oge, %82, %83 : vector<1x16x16xf32>
    %cst_32 = arith.constant 2.000000e-01 : f32
    %85 = vector.broadcast %cst_32 : f32 to vector<1x16x16xf32>
    %86 = arith.mulf %85, %82 : vector<1x16x16xf32>
    %87 = arith.select %84, %82, %86 : vector<1x16x16xi1>, vector<1x16x16xf32>
    %88 = vector.shape_cast %0 : vector<16x16xf32> to vector<1x16x16xf32>
    %89 = arith.addf %87, %88 : vector<1x16x16xf32>
    %cst_33 = arith.constant dense<0xFF800000> : vector<1x16xf32>
    %90 = vector.multi_reduction <maximumf>, %89, %cst_33 [2] : vector<1x16x16xf32> to vector<1x16xf32>
    %91 = vector.shape_cast %90 : vector<1x16xf32> to vector<1x16x1xf32>
    %92 = vector.broadcast %91 : vector<1x16x1xf32> to vector<1x16x16xf32>
    %93 = arith.subf %89, %92 : vector<1x16x16xf32>
    %94 = math.exp %93 : vector<1x16x16xf32>
    %cst_34 = arith.constant dense<0.000000e+00> : vector<1x16xf32>
    %95 = vector.multi_reduction <add>, %94, %cst_34 [2] : vector<1x16x16xf32> to vector<1x16xf32>
    %96 = vector.shape_cast %95 : vector<1x16xf32> to vector<1x16x1xf32>
    %97 = tpu.reciprocal %96 {approx = true} : vector<1x16x1xf32> -> vector<1x16x1xf32>
    %98 = vector.broadcast %97 : vector<1x16x1xf32> to vector<1x16x16xf32>
    %99 = arith.mulf %94, %98 : vector<1x16x16xf32>
    %100 = vector.shape_cast %99 : vector<1x16x16xf32> to vector<16x16xf32>
    %cst_35 = arith.constant dense<0.000000e+00> : vector<16x32xf32>
    %101 = tpu.matmul %100, %73, %cst_35 {dimension_numbers = #tpu.dot_dimension_numbers<[1], [0], [0], [1], [0, 0, 1, 1], [], []>} : vector<16x16xf32>, vector<16x32xf32>, vector<16x32xf32> -> vector<16x32xf32>
    %102 = vector.broadcast %72 : vector<1x32xf32> to vector<16x32xf32>
    %103 = arith.addf %101, %102 : vector<16x32xf32>
    %cst_36 = arith.constant 0.000000e+00 : f32
    %104 = vector.broadcast %cst_36 : f32 to vector<16x32xf32>
    %105 = arith.maximumf %103, %104 : vector<16x32xf32>
    %c0_37 = arith.constant 0 : index
    %c0_38 = arith.constant 0 : index
    %106 = vector.load %arg8[%c0_37, %c0_38] : memref<2x16xf32, #tpu.memory_space<vmem>>, vector<2x16xf32>
    %cst_39 = arith.constant dense<0.000000e+00> : vector<2x32xf32>
    %107 = tpu.matmul %106, %105, %cst_39 {dimension_numbers = #tpu.dot_dimension_numbers<[1], [0], [0], [1], [0, 0, 1, 1], [], []>} : vector<2x16xf32>, vector<16x32xf32>, vector<2x32xf32> -> vector<2x32xf32>
    %cst_40 = arith.constant dense<0.000000e+00> : vector<2xf32>
    %108 = vector.multi_reduction <add>, %106, %cst_40 [1] : vector<2x16xf32> to vector<2xf32>
    %109 = vector.shape_cast %108 : vector<2xf32> to vector<2x1xf32>
    %cst_41 = arith.constant 1.000000e+00 : f32
    %110 = vector.broadcast %cst_41 : f32 to vector<2x1xf32>
    %111 = arith.maximumf %109, %110 : vector<2x1xf32>
    %112 = vector.broadcast %111 : vector<2x1xf32> to vector<2x32xf32>
    %113 = arith.divf %107, %112 : vector<2x32xf32>
    %c0_42 = arith.constant 0 : index
    %c0_43 = arith.constant 0 : index
    %114 = vector.load %arg9[%c0_42, %c0_43] : memref<32x4xf32, #tpu.memory_space<vmem>>, vector<32x4xf32>
    %cst_44 = arith.constant dense<0.000000e+00> : vector<2x4xf32>
    %115 = tpu.matmul %113, %114, %cst_44 {dimension_numbers = #tpu.dot_dimension_numbers<[1], [0], [0], [1], [0, 0, 1, 1], [], []>} : vector<2x32xf32>, vector<32x4xf32>, vector<2x4xf32> -> vector<2x4xf32>
    %c0_45 = arith.constant 0 : index
    %c0_46 = arith.constant 0 : index
    %116 = vector.load %arg10[%c0_45, %c0_46] : memref<1x4xf32, #tpu.memory_space<vmem>>, vector<1x4xf32>
    %117 = vector.broadcast %116 : vector<1x4xf32> to vector<2x4xf32>
    %118 = arith.addf %115, %117 : vector<2x4xf32>
    %cst_47 = arith.constant dense<0xFF800000> : vector<2xf32>
    %119 = vector.multi_reduction <maximumf>, %118, %cst_47 [1] : vector<2x4xf32> to vector<2xf32>
    %120 = vector.shape_cast %119 : vector<2xf32> to vector<2x1xf32>
    %121 = vector.broadcast %120 : vector<2x1xf32> to vector<2x4xf32>
    %122 = arith.subf %118, %121 : vector<2x4xf32>
    %123 = math.exp %122 : vector<2x4xf32>
    %cst_48 = arith.constant dense<0.000000e+00> : vector<2xf32>
    %124 = vector.multi_reduction <add>, %123, %cst_48 [1] : vector<2x4xf32> to vector<2xf32>
    %125 = vector.shape_cast %124 : vector<2xf32> to vector<2x1xf32>
    %126 = math.log %125 : vector<2x1xf32>
    %127 = vector.broadcast %126 : vector<2x1xf32> to vector<2x4xf32>
    %128 = arith.subf %122, %127 : vector<2x4xf32>
    %c0_49 = arith.constant 0 : index
    %c0_50 = arith.constant 0 : index
    %129 = vector.load %arg11[%c0_49, %c0_50] : memref<2x4xf32, #tpu.memory_space<vmem>>, vector<2x4xf32>
    tpu.vector_store %arg11[%c0_49, %c0_50], %128 {strides = array<i32>} : memref<2x4xf32, #tpu.memory_space<vmem>>, vector<2x4xf32>,
    return
  }
}

</mosaic_0001>

<llo_original>
// kernel: tpu_custom_call.1
$region0: #{tpu_custom_call.1}
  #allocation0 [shape = 'u32[]', space=smem, size = 0x4, offset = 0x4, fixed_abs, tag = 'smem constant byte address 0x4 - core index']
  #allocation1 [shape = 'u32[144,128]{1,0:T(1,128)}', space=vmem, size = 0x12000, scoped, tag = 'internal scratch']
  %s0 = inlined_call_operand.vmem [shape: f32[16,16], index: 0, kind: input, shape index: {}]
  %s1 = inlined_call_operand.vmem [shape: f32[16,256], index: 1, kind: input, shape index: {}]
  %s2 = inlined_call_operand.vmem [shape: f32[16,16], index: 2, kind: input, shape index: {}]
  %s3 = inlined_call_operand.vmem [shape: f32[1,256], index: 3, kind: input, shape index: {}]
  %s4 = inlined_call_operand.vmem [shape: f32[256,32], index: 4, kind: input, shape index: {}]
  %s5 = inlined_call_operand.vmem [shape: f32[256,2], index: 5, kind: input, shape index: {}]
  %s6 = inlined_call_operand.vmem [shape: f32[1,32], index: 6, kind: input, shape index: {}]
  %s7 = inlined_call_operand.vmem [shape: f32[16,16], index: 7, kind: input, shape index: {}]
  %s8 = inlined_call_operand.vmem [shape: f32[2,16], index: 8, kind: input, shape index: {}]
  %s9 = inlined_call_operand.vmem [shape: f32[32,4], index: 9, kind: input, shape index: {}]
  %s10 = inlined_call_operand.vmem [shape: f32[1,4], index: 10, kind: input, shape index: {}]
  %s11 = inlined_call_operand.hbm [shape: f32[2,4], index: 11, kind: output, shape index: {}]
  %s12 = sld [smem:[#allocation0]]
  $region54: #{tpu_custom_call.1} parent=0
    _
  %s14 = ssub.s32 1, %s12
  %s15 = scalar_select 0, %s14, %s12
  $region1: #{tpu_custom_call.1} parent=0
    #allocation2 [shape = 'u8[1024]{0}', space=vmem, size = 0x400, scoped, tag = 'output window, operand 0, single buffered']
    #allocation3 [shape = 's32[1]{0}', space=sflag, size = 0x4, scoped, tag = 'scoped memory for tpu_custom_call.1']
    %16 = vsyncpa [#allocation3], 0
    // Predicated region
    $region2: #{tpu_custom_call.1} parent=1 // pred_check
      _
    $region3: #{tpu_custom_call.1} parent=1 // pred_check_branch
      %18 = sbr.rel (0) target = $region5
    $region4: #{tpu_custom_call.1} parent=1 // pred_region
      _
    $region5: #{tpu_custom_call.1} parent=1 // pred_fallthru
      _
    // Predicated region
    $region6: #{tpu_custom_call.1} parent=1 // pred_check
      _
    $region7: #{tpu_custom_call.1} parent=1 // pred_check_branch
      %20 = sbr.rel (0) target = $region9
    $region8: #{tpu_custom_call.1} parent=1 // pred_region
      _
    $region9: #{tpu_custom_call.1} parent=1 // pred_fallthru
      _
    // Predicated region
    $region10: #{tpu_custom_call.1} parent=1 // pred_check
      _
    $region11: #{tpu_custom_call.1} parent=1 // pred_check_branch
      %22 = sbr.rel (0) target = $region13
    $region12: #{tpu_custom_call.1} parent=1 // pred_region
      _
    $region13: #{tpu_custom_call.1} parent=1 // pred_fallthru
      _
    // Predicated region
    $region14: #{tpu_custom_call.1} parent=1 // pred_check
      _
    $region15: #{tpu_custom_call.1} parent=1 // pred_check_branch
      %24 = sbr.rel (0) target = $region17
    $region16: #{tpu_custom_call.1} parent=1 // pred_region
      _
    $region17: #{tpu_custom_call.1} parent=1 // pred_fallthru
      _
    // Predicated region
    $region18: #{tpu_custom_call.1} parent=1 // pred_check
      _
    $region19: #{tpu_custom_call.1} parent=1 // pred_check_branch
      %26 = sbr.rel (0) target = $region21
    $region20: #{tpu_custom_call.1} parent=1 // pred_region
      _
    $region21: #{tpu_custom_call.1} parent=1 // pred_fallthru
      _
    // Predicated region
    $region22: #{tpu_custom_call.1} parent=1 // pred_check
      _
    $region23: #{tpu_custom_call.1} parent=1 // pred_check_branch
      %28 = sbr.rel (0) target = $region25
    $region24: #{tpu_custom_call.1} parent=1 // pred_region
      _
    $region25: #{tpu_custom_call.1} parent=1 // pred_fallthru
      _
    // Predicated region
    $region26: #{tpu_custom_call.1} parent=1 // pred_check
      _
    $region27: #{tpu_custom_call.1} parent=1 // pred_check_branch
      %30 = sbr.rel (0) target = $region29
    $region28: #{tpu_custom_call.1} parent=1 // pred_region
      _
    $region29: #{tpu_custom_call.1} parent=1 // pred_fallthru
      _
    // Predicated region
    $region30: #{tpu_custom_call.1} parent=1 // pred_check
      _
    $region31: #{tpu_custom_call.1} parent=1 // pred_check_branch
      %32 = sbr.rel (0) target = $region33
    $region32: #{tpu_custom_call.1} parent=1 // pred_region
      _
    $region33: #{tpu_custom_call.1} parent=1 // pred_fallthru
      _
    // Predicated region
    $region34: #{tpu_custom_call.1} parent=1 // pred_check
      _
    $region35: #{tpu_custom_call.1} parent=1 // pred_check_branch
      %34 = sbr.rel (0) target = $region37
    $region36: #{tpu_custom_call.1} parent=1 // pred_region
      _
    $region37: #{tpu_custom_call.1} parent=1 // pred_fallthru
      _
    // Predicated region
    $region38: #{tpu_custom_call.1} parent=1 // pred_check
      _
    $region39: #{tpu_custom_call.1} parent=1 // pred_check_branch
      %36 = sbr.rel (0) target = $region41
    $region40: #{tpu_custom_call.1} parent=1 // pred_region
      _
    $region41: #{tpu_custom_call.1} parent=1 // pred_fallthru
      _
    // Predicated region
    $region42: #{tpu_custom_call.1} parent=1 // pred_check
      _
    $region43: #{tpu_custom_call.1} parent=1 // pred_check_branch
      %38 = sbr.rel (0) target = $region45
    $region44: #{tpu_custom_call.1} parent=1 // pred_region
      _
    $region45: #{tpu_custom_call.1} parent=1 // pred_fallthru
      _
    %v39 = vld [vmem:[%s7] sm:$0xff]
    %v40 = vld [vmem:[%s7 + $0x8] sm:$0xff]
    %v41 = vld [vmem:[%s0] sm:$0xff]
    %v42 = vld [vmem:[%s0 + $0x8] sm:$0xff]
    %v43 = vld [vmem:[%s1] sm:$0xff]
    %v44 = vld [vmem:[%s1 + $0x8] sm:$0xff]
    %v45 = vld [vmem:[%s1 + $0x10] sm:$0xff]
    %v46 = vld [vmem:[%s1 + $0x18] sm:$0xff]
    %v47 = vld [vmem:[%s2] sm:$0xff]
    %v48 = vld [vmem:[%s2 + $0x8] sm:$0xff]
    %v49 = vld [vmem:[%s3] sm:$0x3]
    %vm50 = vcmask 130048
    %v52 = vsel %vm50, %v41, 0
    %v55 = vsel %vm50, %v42, 0
    %57 = vmatprep.subr.mxu0 0.0
    %58 = vmatpush1.msra.mxu0 0.0
    %59 = vmatprep.subr.mxu0 0.0
    %60 = vmatpush1.msra.mxu0 0.0
    %61 = vmatprep.subr.mxu0 0.0
    %62 = vmatpush1.msra.mxu0 0.0
    %63 = vmatprep.subr.mxu0 0.0
    %64 = vmatpush1.msra.mxu0 0.0
    %65 = vmatprep.subr.mxu0 0.0
    %66 = vmatpush1.msra.mxu0 0.0
    %67 = vmatprep.subr.mxu0 0.0
    %68 = vmatpush1.msra.mxu0 0.0
    %69 = vmatprep.subr.mxu0 0.0
    %70 = vmatpush1.msra.mxu0 0.0
    %71 = vmatprep.subr.mxu0 0.0
    %72 = vmatpush1.msra.mxu0 0.0
    %73 = vmatprep.subr.mxu0 0.0
    %74 = vmatpush1.msra.mxu0 0.0
    %75 = vmatprep.subr.mxu0 0.0
    %76 = vmatpush1.msra.mxu0 0.0
    %77 = vmatprep.subr.mxu0 0.0
    %78 = vmatpush1.msra.mxu0 0.0
    %79 = vmatprep.subr.mxu0 0.0
    %80 = vmatpush1.msra.mxu0 0.0
    %81 = vmatprep.subr.mxu0 0.0
    %82 = vmatpush1.msra.mxu0 0.0
    %83 = vmatprep.subr.mxu0 0.0
    %84 = vmatpush1.msra.mxu0 0.0
    %85 = vmatprep.subr.mxu0 %v46
    %86 = vmatpush1.msra.mxu0 %v45
    %87 = vmatprep.subr.mxu0 %v44
    %88 = vmatpush1.msra.mxu0 %v43
    %89 = vmatprep.subr.mxu0 0.0
    %90 = vmatpush2.msra.mxu0 0.0
    %91 = vmatprep.subr.mxu0 0.0
    %92 = vmatpush2.msra.mxu0 0.0
    %93 = vmatprep.subr.mxu0 0.0
    %94 = vmatpush2.msra.mxu0 0.0
    %95 = vmatprep.subr.mxu0 0.0
    %96 = vmatpush2.msra.mxu0 0.0
    %97 = vmatprep.subr.mxu0 0.0
    %98 = vmatpush2.msra.mxu0 0.0
    %99 = vmatprep.subr.mxu0 0.0
    %100 = vmatpush2.msra.mxu0 0.0
    %101 = vmatprep.subr.mxu0 0.0
    %102 = vmatpush2.msra.mxu0 0.0
    %103 = vmatprep.subr.mxu0 0.0
    %104 = vmatpush2.msra.mxu0 0.0
    %105 = vmatprep.subr.mxu0 0.0
    %106 = vmatpush2.msra.mxu0 0.0
    %107 = vmatprep.subr.mxu0 0.0
    %108 = vmatpush2.msra.mxu0 0.0
    %109 = vmatprep.subr.mxu0 0.0
    %110 = vmatpush2.msra.mxu0 0.0
    %111 = vmatprep.subr.mxu0 0.0
    %112 = vmatpush2.msra.mxu0 0.0
    %113 = vmatprep.subr.mxu0 0.0
    %114 = vmatpush2.msra.mxu0 0.0
    %115 = vmatprep.subr.mxu0 0.0
    %116 = vmatpush2.msra.mxu0 0.0
    %117 = vmatprep.subr.mxu0 0.0
    %118 = vmatpush2.msra.mxu0 0.0
    %119 = vmatprep.subr.mxu0 0.0
    %120 = vmatpush2.msra.mxu0 0.0
    %121 = vmatprep.mubr.f32.mxu0 0.0
    %122 = vmatmul.mubr.f32.gmra.mxu0 %v52
    %v123 = vpop.f32.mrf.mxu0
    %v124 = vadd.f32 0.0, %v123
    %v125 = vpop.f32.mrf.mxu0
    %v126 = vadd.f32 0.0, %v125
    %127 = vmatprep.mubr.f32.mxu0 0.0
    %128 = vmatmul.mubr.f32.gmra.mxu0 %v55
    %v129 = vpop.f32.mrf.mxu0
    %v130 = vadd.f32 0.0, %v129
    %v131 = vpop.f32.mrf.mxu0
    %v132 = vadd.f32 0.0, %v131
    %133 = vdwg.mxu0
    %134 = vmatprep.subr.mxu0 0.0
    %135 = vmatpush1.msra.mxu0 0.0
    %136 = vmatprep.subr.mxu0 0.0
    %137 = vmatpush1.msra.mxu0 0.0
    %138 = vmatprep.subr.mxu0 0.0
    %139 = vmatpush1.msra.mxu0 0.0
    %140 = vmatprep.subr.mxu0 0.0
    %141 = vmatpush1.msra.mxu0 0.0
    %142 = vmatprep.subr.mxu0 0.0
    %143 = vmatpush1.msra.mxu0 0.0
    %144 = vmatprep.subr.mxu0 0.0
    %145 = vmatpush1.msra.mxu0 0.0
    %146 = vmatprep.subr.mxu0 0.0
    %147 = vmatpush1.msra.mxu0 0.0
    %148 = vmatprep.subr.mxu0 0.0
    %149 = vmatpush1.msra.mxu0 0.0
    %150 = vmatprep.subr.mxu0 0.0
    %151 = vmatpush1.msra.mxu0 0.0
    %152 = vmatprep.subr.mxu0 0.0
    %153 = vmatpush1.msra.mxu0 0.0
    %154 = vmatprep.subr.mxu0 0.0
    %155 = vmatpush1.msra.mxu0 0.0
    %156 = vmatprep.subr.mxu0 0.0
    %157 = vmatpush1.msra.mxu0 0.0
    %158 = vmatprep.subr.mxu0 0.0
    %159 = vmatpush1.msra.mxu0 0.0
    %160 = vmatprep.subr.mxu0 0.0
    %161 = vmatpush1.msra.mxu0 0.0
    %162 = vmatprep.subr.mxu0 0.0
    %163 = vmatpush1.msra.mxu0 %v48
    %164 = vmatprep.subr.mxu0 0.0
    %165 = vmatpush1.msra.mxu0 %v47
    %166 = vmatprep.subr.mxu0 0.0
    %167 = vmatpush2.msra.mxu0 0.0
    %168 = vmatprep.subr.mxu0 0.0
    %169 = vmatpush2.msra.mxu0 0.0
    %170 = vmatprep.subr.mxu0 0.0
    %171 = vmatpush2.msra.mxu0 0.0
    %172 = vmatprep.subr.mxu0 0.0
    %173 = vmatpush2.msra.mxu0 0.0
    %174 = vmatprep.subr.mxu0 0.0
    %175 = vmatpush2.msra.mxu0 0.0
    %176 = vmatprep.subr.mxu0 0.0
    %177 = vmatpush2.msra.mxu0 0.0
    %178 = vmatprep.subr.mxu0 0.0
    %179 = vmatpush2.msra.mxu0 0.0
    %180 = vmatprep.subr.mxu0 0.0
    %181 = vmatpush2.msra.mxu0 0.0
    %182 = vmatprep.subr.mxu0 0.0
    %183 = vmatpush2.msra.mxu0 0.0
    %184 = vmatprep.subr.mxu0 0.0
    %185 = vmatpush2.msra.mxu0 0.0
    %186 = vmatprep.subr.mxu0 0.0
    %187 = vmatpush2.msra.mxu0 0.0
    %188 = vmatprep.subr.mxu0 0.0
    %189 = vmatpush2.msra.mxu0 0.0
    %190 = vmatprep.subr.mxu0 0.0
    %191 = vmatpush2.msra.mxu0 0.0
    %192 = vmatprep.subr.mxu0 0.0
    %193 = vmatpush2.msra.mxu0 0.0
    %194 = vmatprep.subr.mxu0 0.0
    %195 = vmatpush2.msra.mxu0 0.0
    %196 = vmatprep.subr.mxu0 0.0
    %197 = vmatpush2.msra.mxu0 0.0
    %198 = vmatprep.mubr.f32.mxu0 0.0
    %199 = vmatmul.mubr.f32.gmra.mxu0 %v52
    %v200 = vpop.f32.mrf.mxu0
    %v201 = vadd.f32 0.0, %v200
    %v202 = vpop.f32.mrf.mxu0
    %203 = vmatprep.mubr.f32.mxu0 0.0
    %204 = vmatmul.mubr.f32.gmra.mxu0 %v55
    %v205 = vpop.f32.mrf.mxu0
    %v206 = vadd.f32 0.0, %v205
    %v207 = vpop.f32.mrf.mxu0
    %208 = vdwg.mxu0
    %209 = vxpose.xlu0.b32.start [1/16] %v201, 128
    %210 = vxpose.xlu0.b32.cont [2/16] %v206, 128
    %211 = vxpose.xlu0.b32.cont [3/16] 0.0, 128
    %212 = vxpose.xlu0.b32.cont [4/16] 0.0, 128
    %213 = vxpose.xlu0.b32.cont [5/16] 0.0, 128
    %214 = vxpose.xlu0.b32.cont [6/16] 0.0, 128
    %215 = vxpose.xlu0.b32.cont [7/16] 0.0, 128
    %216 = vxpose.xlu0.b32.cont [8/16] 0.0, 128
    %217 = vxpose.xlu0.b32.cont [9/16] 0.0, 128
    %218 = vxpose.xlu0.b32.cont [10/16] 0.0, 128
    %219 = vxpose.xlu0.b32.cont [11/16] 0.0, 128
    %220 = vxpose.xlu0.b32.cont [12/16] 0.0, 128
    %221 = vxpose.xlu0.b32.cont [13/16] 0.0, 128
    %222 = vxpose.xlu0.b32.cont [14/16] 0.0, 128
    %223 = vxpose.xlu0.b32.cont [15/16] 0.0, 128
    %224 = vxpose.xlu0.b32.end [16/16] 0.0, 128
    %v225 = vpop.trf.xlu0
    %v226 = vpop.trf.xlu0
    %v227 = vpop.trf.xlu0
    %v228 = vpop.trf.xlu0
    %v229 = vpop.trf.xlu0
    %v230 = vpop.trf.xlu0
    %v231 = vpop.trf.xlu0
    %v232 = vpop.trf.xlu0
    %v233 = vpop.trf.xlu0
    %v234 = vpop.trf.xlu0
    %v235 = vpop.trf.xlu0
    %v236 = vpop.trf.xlu0
    %v237 = vpop.trf.xlu0
    %v238 = vpop.trf.xlu0
    %v239 = vpop.trf.xlu0
    %v240 = vpop.trf.xlu0
    %v241 = vlaneseq
    %v242 = vshrl.u32 %v241, 7
    %v243 = vsub.s32 0, %v242
    %v244 = vrot.slane %v225, %v243
    %246 = vbcast.lane.b32.xlu0 %v244, 256
    %v247 = vpop.permute.xlu0 %246
    %s249 = sor.u32 256, 8
    %250 = vbcast.lane.b32.xlu0 %v244, %s249
    %v251 = vpop.permute.xlu0 %250
    %v252 = vlaneseq
    %v253 = vshrl.u32 %v252, 7
    %v254 = vsub.s32 1, %v253
    %v255 = vrot.slane %v225, %v254
    %257 = vbcast.lane.b32.xlu0 %v255, 256
    %v258 = vpop.permute.xlu0 %257
    %s260 = sor.u32 256, 8
    %261 = vbcast.lane.b32.xlu0 %v255, %s260
    %v262 = vpop.permute.xlu0 %261
    %v263 = vlaneseq
    %v264 = vshrl.u32 %v263, 7
    %v265 = vsub.s32 2, %v264
    %v266 = vrot.slane %v225, %v265
    %268 = vbcast.lane.b32.xlu0 %v266, 256
    %v269 = vpop.permute.xlu0 %268
    %s271 = sor.u32 256, 8
    %272 = vbcast.lane.b32.xlu0 %v266, %s271
    %v273 = vpop.permute.xlu0 %272
    %v274 = vlaneseq
    %v275 = vshrl.u32 %v274, 7
    %v276 = vsub.s32 3, %v275
    %v277 = vrot.slane %v225, %v276
    %279 = vbcast.lane.b32.xlu0 %v277, 256
    %v280 = vpop.permute.xlu0 %279
    %s282 = sor.u32 256, 8
    %283 = vbcast.lane.b32.xlu0 %v277, %s282
    %v284 = vpop.permute.xlu0 %283
    %v285 = vlaneseq
    %v286 = vshrl.u32 %v285, 7
    %v287 = vsub.s32 4, %v286
    %v288 = vrot.slane %v225, %v287
    %290 = vbcast.lane.b32.xlu0 %v288, 256
    %v291 = vpop.permute.xlu0 %290
    %s293 = sor.u32 256, 8
    %294 = vbcast.lane.b32.xlu0 %v288, %s293
    %v295 = vpop.permute.xlu0 %294
    %v296 = vlaneseq
    %v297 = vshrl.u32 %v296, 7
    %v298 = vsub.s32 5, %v297
    %v299 = vrot.slane %v225, %v298
    %301 = vbcast.lane.b32.xlu0 %v299, 256
    %v302 = vpop.permute.xlu0 %301
    %s304 = sor.u32 256, 8
    %305 = vbcast.lane.b32.xlu0 %v299, %s304
    %v306 = vpop.permute.xlu0 %305
    %v307 = vlaneseq
    %v308 = vshrl.u32 %v307, 7
    %v309 = vsub.s32 6, %v308
    %v310 = vrot.slane %v225, %v309
    %312 = vbcast.lane.b32.xlu0 %v310, 256
    %v313 = vpop.permute.xlu0 %312
    %s315 = sor.u32 256, 8
    %316 = vbcast.lane.b32.xlu0 %v310, %s315
    %v317 = vpop.permute.xlu0 %316
    %v318 = vlaneseq
    %v319 = vshrl.u32 %v318, 7
    %v320 = vsub.s32 7, %v319
    %v321 = vrot.slane %v225, %v320
    %323 = vbcast.lane.b32.xlu0 %v321, 256
    %v324 = vpop.permute.xlu0 %323
    %s326 = sor.u32 256, 8
    %327 = vbcast.lane.b32.xlu0 %v321, %s326
    %v328 = vpop.permute.xlu0 %327
    %v330 = vcombine.high %v226, %v226
    %v332 = vunpack.c.l.s4 1966171168
    %v333 = vunpack.c.0.s8 %v332
    %v334 = vlaneseq
    %v335 = vshrl.u32 %v334, 7
    %v336 = vsub.s32 %v333, %v335
    %v337 = vrot.slane %v226, %v336
    %v339 = vunpack.c.l.s4 1966171168
    %v340 = vunpack.c.0.s8 %v339
    %v341 = vlaneseq
    %v342 = vshrl.u32 %v341, 7
    %v343 = vsub.s32 %v340, %v342
    %v344 = vrot.slane %v330, %v343
    %v345 = vcombine.high %v337, %v337
    %v346 = vcombine.high %v344, %v344
    %v348 = vunpack.c.l.s4 1966171168
    %v349 = vunpack.c.0.s8 %v348
    %v350 = vlaneseq
    %v351 = vshrl.u32 %v350, 7
    %v352 = vsub.s32 %v349, %v351
    %v353 = vrot.slane %v337, %v352
    %v355 = vunpack.c.l.s4 1966171168
    %v356 = vunpack.c.0.s8 %v355
    %v357 = vlaneseq
    %v358 = vshrl.u32 %v357, 7
    %v359 = vsub.s32 %v356, %v358
    %v360 = vrot.slane %v344, %v359
    %v362 = vunpack.c.l.s4 1966171168
    %v363 = vunpack.c.0.s8 %v362
    %v364 = vlaneseq
    %v365 = vshrl.u32 %v364, 7
    %v366 = vsub.s32 %v363, %v365
    %v367 = vrot.slane %v345, %v366
    %v369 = vunpack.c.l.s4 1966171168
    %v370 = vunpack.c.0.s8 %v369
    %v371 = vlaneseq
    %v372 = vshrl.u32 %v371, 7
    %v373 = vsub.s32 %v370, %v372
    %v374 = vrot.slane %v346, %v373
    %v375 = vcombine.high %v353, %v353
    %v376 = vcombine.high %v360, %v360
    %v377 = vcombine.high %v367, %v367
    %v378 = vcombine.high %v374, %v374
    %v379 = vlaneseq
    %v380 = vshrl.u32 %v379, 7
    %v381 = vsub.s32 0, %v380
    %v382 = vrot.slane %v353, %v381
    %v383 = vlaneseq
    %v384 = vshrl.u32 %v383, 7
    %v385 = vsub.s32 0, %v384
    %v386 = vrot.slane %v367, %v385
    %v387 = vlaneseq
    %v388 = vshrl.u32 %v387, 7
    %v389 = vsub.s32 0, %v388
    %v390 = vrot.slane %v375, %v389
    %v391 = vlaneseq
    %v392 = vshrl.u32 %v391, 7
    %v393 = vsub.s32 0, %v392
    %v394 = vrot.slane %v377, %v393
    %v395 = vlaneseq
    %v396 = vshrl.u32 %v395, 7
    %v397 = vsub.s32 0, %v396
    %v398 = vrot.slane %v360, %v397
    %v399 = vlaneseq
    %v400 = vshrl.u32 %v399, 7
    %v401 = vsub.s32 0, %v400
    %v402 = vrot.slane %v374, %v401
    %v403 = vlaneseq
    %v404 = vshrl.u32 %v403, 7
    %v405 = vsub.s32 0, %v404
    %v406 = vrot.slane %v376, %v405
    %v407 = vlaneseq
    %v408 = vshrl.u32 %v407, 7
    %v409 = vsub.s32 0, %v408
    %v410 = vrot.slane %v378, %v409
    %v419 = vadd.f32 %v247, %v382
    %v420 = vadd.f32 %v251, %v382
    %v421 = vadd.f32 %v258, %v386
    %v422 = vadd.f32 %v262, %v386
    %v423 = vadd.f32 %v269, %v390
    %v424 = vadd.f32 %v273, %v390
    %v425 = vadd.f32 %v280, %v394
    %v426 = vadd.f32 %v284, %v394
    %v427 = vadd.f32 %v291, %v398
    %v428 = vadd.f32 %v295, %v398
    %v429 = vadd.f32 %v302, %v402
    %v430 = vadd.f32 %v306, %v402
    %v431 = vadd.f32 %v313, %v406
    %v432 = vadd.f32 %v317, %v406
    %v433 = vadd.f32 %v324, %v410
    %v434 = vadd.f32 %v328, %v410
    %vm435 = vcmp.ge.f32.partialorder %v419, 0.0
    %vm436 = vcmp.ge.f32.partialorder %v420, 0.0
    %vm437 = vcmp.ge.f32.partialorder %v421, 0.0
    %vm438 = vcmp.ge.f32.partialorder %v422, 0.0
    %vm439 = vcmp.ge.f32.partialorder %v423, 0.0
    %vm440 = vcmp.ge.f32.partialorder %v424, 0.0
    %vm441 = vcmp.ge.f32.partialorder %v425, 0.0
    %vm442 = vcmp.ge.f32.partialorder %v426, 0.0
    %vm443 = vcmp.ge.f32.partialorder %v427, 0.0
    %vm444 = vcmp.ge.f32.partialorder %v428, 0.0
    %vm445 = vcmp.ge.f32.partialorder %v429, 0.0
    %vm446 = vcmp.ge.f32.partialorder %v430, 0.0
    %vm447 = vcmp.ge.f32.partialorder %v431, 0.0
    %vm448 = vcmp.ge.f32.partialorder %v432, 0.0
    %vm449 = vcmp.ge.f32.partialorder %v433, 0.0
    %vm450 = vcmp.ge.f32.partialorder %v434, 0.0
    %v451 = vmul.f32 %v419, 0.2
    %v452 = vmul.f32 %v420, 0.2
    %v453 = vmul.f32 %v421, 0.2
    %v454 = vmul.f32 %v422, 0.2
    %v455 = vmul.f32 %v423, 0.2
    %v456 = vmul.f32 %v424, 0.2
    %v457 = vmul.f32 %v425, 0.2
    %v458 = vmul.f32 %v426, 0.2
    %v459 = vmul.f32 %v427, 0.2
    %v460 = vmul.f32 %v428, 0.2
    %v461 = vmul.f32 %v429, 0.2
    %v462 = vmul.f32 %v430, 0.2
    %v463 = vmul.f32 %v431, 0.2
    %v464 = vmul.f32 %v432, 0.2
    %v465 = vmul.f32 %v433, 0.2
    %v466 = vmul.f32 %v434, 0.2
    %v467 = vsel %vm435, %v419, %v451
    %v468 = vsel %vm436, %v420, %v452
    %v469 = vsel %vm437, %v421, %v453
    %v470 = vsel %vm438, %v422, %v454
    %v471 = vsel %vm439, %v423, %v455
    %v472 = vsel %vm440, %v424, %v456
    %v473 = vsel %vm441, %v425, %v457
    %v474 = vsel %vm442, %v426, %v458
    %v475 = vsel %vm443, %v427, %v459
    %v476 = vsel %vm444, %v428, %v460
    %v477 = vsel %vm445, %v429, %v461
    %v478 = vsel %vm446, %v430, %v462
    %v479 = vsel %vm447, %v431, %v463
    %v480 = vsel %vm448, %v432, %v464
    %v481 = vsel %vm449, %v433, %v465
    %v482 = vsel %vm450, %v434, %v466
    %v483 = vadd.f32 %v467, %v39
    %v484 = vadd.f32 %v468, %v40
    %v485 = vadd.f32 %v469, %v39
    %v486 = vadd.f32 %v470, %v40
    %v487 = vadd.f32 %v471, %v39
    %v488 = vadd.f32 %v472, %v40
    %v489 = vadd.f32 %v473, %v39
    %v490 = vadd.f32 %v474, %v40
    %v491 = vadd.f32 %v475, %v39
    %v492 = vadd.f32 %v476, %v40
    %v493 = vadd.f32 %v477, %v39
    %v494 = vadd.f32 %v478, %v40
    %v495 = vadd.f32 %v479, %v39
    %v496 = vadd.f32 %v480, %v40
    %v497 = vadd.f32 %v481, %v39
    %v498 = vadd.f32 %v482, %v40
    %v499 = vsel %vm50, %v483, -inf
    %500 = vmax.xlane.f32.xlu0 %v499
    %v501 = vpop.xlane.xlu0 %500
    %v502 = vsel %vm50, %v484, -inf
    %503 = vmax.xlane.f32.xlu0 %v502
    %v504 = vpop.xlane.xlu0 %503
    %v505 = vsel %vm50, %v485, -inf
    %506 = vmax.xlane.f32.xlu0 %v505
    %v507 = vpop.xlane.xlu0 %506
    %v508 = vsel %vm50, %v486, -inf
    %509 = vmax.xlane.f32.xlu0 %v508
    %v510 = vpop.xlane.xlu0 %509
    %v511 = vsel %vm50, %v487, -inf
    %512 = vmax.xlane.f32.xlu0 %v511
    %v513 = vpop.xlane.xlu0 %512
    %v514 = vsel %vm50, %v488, -inf
    %515 = vmax.xlane.f32.xlu0 %v514
    %v516 = vpop.xlane.xlu0 %515
    %v517 = vsel %vm50, %v489, -inf
    %518 = vmax.xlane.f32.xlu0 %v517
    %v519 = vpop.xlane.xlu0 %518
    %v520 = vsel %vm50, %v490, -inf
    %521 = vmax.xlane.f32.xlu0 %v520
    %v522 = vpop.xlane.xlu0 %521
    %v523 = vsel %vm50, %v491, -inf
    %524 = vmax.xlane.f32.xlu0 %v523
    %v525 = vpop.xlane.xlu0 %524
    %v526 = vsel %vm50, %v492, -inf
    %527 = vmax.xlane.f32.xlu0 %v526
    %v528 = vpop.xlane.xlu0 %527
    %v529 = vsel %vm50, %v493, -inf
    %530 = vmax.xlane.f32.xlu0 %v529
    %v531 = vpop.xlane.xlu0 %530
    %v532 = vsel %vm50, %v494, -inf
    %533 = vmax.xlane.f32.xlu0 %v532
    %v534 = vpop.xlane.xlu0 %533
    %v535 = vsel %vm50, %v495, -inf
    %536 = vmax.xlane.f32.xlu0 %v535
    %v537 = vpop.xlane.xlu0 %536
    %v538 = vsel %vm50, %v496, -inf
    %539 = vmax.xlane.f32.xlu0 %v538
    %v540 = vpop.xlane.xlu0 %539
    %v541 = vsel %vm50, %v497, -inf
    %542 = vmax.xlane.f32.xlu0 %v541
    %v543 = vpop.xlane.xlu0 %542
    %v544 = vsel %vm50, %v498, -inf
    %545 = vmax.xlane.f32.xlu0 %v544
    %v546 = vpop.xlane.xlu0 %545
    %v547 = vsub.f32 %v483, %v501
    %v548 = vsub.f32 %v484, %v504
    %v549 = vsub.f32 %v485, %v507
    %v550 = vsub.f32 %v486, %v510
    %v551 = vsub.f32 %v487, %v513
    %v552 = vsub.f32 %v488, %v516
    %v553 = vsub.f32 %v489, %v519
    %v554 = vsub.f32 %v490, %v522
    %v555 = vsub.f32 %v491, %v525
    %v556 = vsub.f32 %v492, %v528
    %v557 = vsub.f32 %v493, %v531
    %v558 = vsub.f32 %v494, %v534
    %v559 = vsub.f32 %v495, %v537
    %v560 = vsub.f32 %v496, %v540
    %v561 = vsub.f32 %v497, %v543
    %v562 = vsub.f32 %v498, %v546
    %v563 = vmul.f32 %v547, 1.442695
    %v564 = vpow.pop %v563
    %v565 = vmul.f32 %v548, 1.442695
    %v566 = vpow.pop %v565
    %v567 = vmul.f32 %v549, 1.442695
    %v568 = vpow.pop %v567
    %v569 = vmul.f32 %v550, 1.442695
    %v570 = vpow.pop %v569
    %v571 = vmul.f32 %v551, 1.442695
    %v572 = vpow.pop %v571
    %v573 = vmul.f32 %v552, 1.442695
    %v574 = vpow.pop %v573
    %v575 = vmul.f32 %v553, 1.442695
    %v576 = vpow.pop %v575
    %v577 = vmul.f32 %v554, 1.442695
    %v578 = vpow.pop %v577
    %v579 = vmul.f32 %v555, 1.442695
    %v580 = vpow.pop %v579
    %v581 = vmul.f32 %v556, 1.442695
    %v582 = vpow.pop %v581
    %v583 = vmul.f32 %v557, 1.442695
    %v584 = vpow.pop %v583
    %v585 = vmul.f32 %v558, 1.442695
    %v586 = vpow.pop %v585
    %v587 = vmul.f32 %v559, 1.442695
    %v588 = vpow.pop %v587
    %v589 = vmul.f32 %v560, 1.442695
    %v590 = vpow.pop %v589
    %v591 = vmul.f32 %v561, 1.442695
    %v592 = vpow.pop %v591
    %v593 = vmul.f32 %v562, 1.442695
    %v594 = vpow.pop %v593
    %v595 = vsel %vm50, %v564, 0.0
    %596 = vadd.xlane.f32.xlu0 %v595
    %v597 = vpop.xlane.xlu0 %596
    %v598 = vsel %vm50, %v566, 0.0
    %599 = vadd.xlane.f32.xlu0 %v598
    %v600 = vpop.xlane.xlu0 %599
    %v601 = vsel %vm50, %v568, 0.0
    %602 = vadd.xlane.f32.xlu0 %v601
    %v603 = vpop.xlane.xlu0 %602
    %v604 = vsel %vm50, %v570, 0.0
    %605 = vadd.xlane.f32.xlu0 %v604
    %v606 = vpop.xlane.xlu0 %605
    %v607 = vsel %vm50, %v572, 0.0
    %608 = vadd.xlane.f32.xlu0 %v607
    %v609 = vpop.xlane.xlu0 %608
    %v610 = vsel %vm50, %v574, 0.0
    %611 = vadd.xlane.f32.xlu0 %v610
    %v612 = vpop.xlane.xlu0 %611
    %v613 = vsel %vm50, %v576, 0.0
    %614 = vadd.xlane.f32.xlu0 %v613
    %v615 = vpop.xlane.xlu0 %614
    %v616 = vsel %vm50, %v578, 0.0
    %617 = vadd.xlane.f32.xlu0 %v616
    %v618 = vpop.xlane.xlu0 %617
    %v619 = vsel %vm50, %v580, 0.0
    %620 = vadd.xlane.f32.xlu0 %v619
    %v621 = vpop.xlane.xlu0 %620
    %v622 = vsel %vm50, %v582, 0.0
    %623 = vadd.xlane.f32.xlu0 %v622
    %v624 = vpop.xlane.xlu0 %623
    %v625 = vsel %vm50, %v584, 0.0
    %626 = vadd.xlane.f32.xlu0 %v625
    %v627 = vpop.xlane.xlu0 %626
    %v628 = vsel %vm50, %v586, 0.0
    %629 = vadd.xlane.f32.xlu0 %v628
    %v630 = vpop.xlane.xlu0 %629
    %v631 = vsel %vm50, %v588, 0.0
    %632 = vadd.xlane.f32.xlu0 %v631
    %v633 = vpop.xlane.xlu0 %632
    %v634 = vsel %vm50, %v590, 0.0
    %635 = vadd.xlane.f32.xlu0 %v634
    %v636 = vpop.xlane.xlu0 %635
    %v637 = vsel %vm50, %v592, 0.0
    %638 = vadd.xlane.f32.xlu0 %v637
    %v639 = vpop.xlane.xlu0 %638
    %v640 = vsel %vm50, %v594, 0.0
    %641 = vadd.xlane.f32.xlu0 %v640
    %v642 = vpop.xlane.xlu0 %641
    %v643 = vrcp.pop %v597
    %v644 = vrcp.pop %v600
    %v645 = vrcp.pop %v603
    %v646 = vrcp.pop %v606
    %v647 = vrcp.pop %v609
    %v648 = vrcp.pop %v612
    %v649 = vrcp.pop %v615
    %v650 = vrcp.pop %v618
    %v651 = vrcp.pop %v621
    %v652 = vrcp.pop %v624
    %v653 = vrcp.pop %v627
    %v654 = vrcp.pop %v630
    %v655 = vrcp.pop %v633
    %v656 = vrcp.pop %v636
    %v657 = vrcp.pop %v639
    %v658 = vrcp.pop %v642
    %v659 = vmul.f32 %v564, %v643
    %v660 = vmul.f32 %v566, %v644
    %v661 = vmul.f32 %v568, %v645
    %v662 = vmul.f32 %v570, %v646
    %v663 = vmul.f32 %v572, %v647
    %v664 = vmul.f32 %v574, %v648
    %v665 = vmul.f32 %v576, %v649
    %v666 = vmul.f32 %v578, %v650
    %v667 = vmul.f32 %v580, %v651
    %v668 = vmul.f32 %v582, %v652
    %v669 = vmul.f32 %v584, %v653
    %v670 = vmul.f32 %v586, %v654
    %v671 = vmul.f32 %v588, %v655
    %v672 = vmul.f32 %v590, %v656
    %v673 = vmul.f32 %v592, %v657
    %v674 = vmul.f32 %v594, %v658
    %v676 = vsel %vm50, %v659, 0
    %v679 = vsel %vm50, %v660, 0
    %681 = vmatprep.subr.mxu0 0.0
    %682 = vmatpush1.msra.mxu0 0.0
    %683 = vmatprep.subr.mxu0 0.0
    %684 = vmatpush1.msra.mxu0 0.0
    %685 = vmatprep.subr.mxu0 0.0
    %686 = vmatpush1.msra.mxu0 0.0
    %687 = vmatprep.subr.mxu0 0.0
    %688 = vmatpush1.msra.mxu0 0.0
    %689 = vmatprep.subr.mxu0 0.0
    %690 = vmatpush1.msra.mxu0 0.0
    %691 = vmatprep.subr.mxu0 0.0
    %692 = vmatpush1.msra.mxu0 0.0
    %693 = vmatprep.subr.mxu0 0.0
    %694 = vmatpush1.msra.mxu0 0.0
    %695 = vmatprep.subr.mxu0 0.0
    %696 = vmatpush1.msra.mxu0 0.0
    %697 = vmatprep.subr.mxu0 0.0
    %698 = vmatpush1.msra.mxu0 0.0
    %699 = vmatprep.subr.mxu0 0.0
    %700 = vmatpush1.msra.mxu0 0.0
    %701 = vmatprep.subr.mxu0 0.0
    %702 = vmatpush1.msra.mxu0 0.0
    %703 = vmatprep.subr.mxu0 0.0
    %704 = vmatpush1.msra.mxu0 0.0
    %705 = vmatprep.subr.mxu0 0.0
    %706 = vmatpush1.msra.mxu0 0.0
    %707 = vmatprep.subr.mxu0 0.0
    %708 = vmatpush1.msra.mxu0 0.0
    %709 = vmatprep.subr.mxu0 0.0
    %710 = vmatpush1.msra.mxu0 %v130
    %711 = vmatprep.subr.mxu0 0.0
    %712 = vmatpush1.msra.mxu0 %v124
    %713 = vmatprep.subr.mxu0 0.0
    %714 = vmatpush2.msra.mxu0 0.0
    %715 = vmatprep.subr.mxu0 0.0
    %716 = vmatpush2.msra.mxu0 0.0
    %717 = vmatprep.subr.mxu0 0.0
    %718 = vmatpush2.msra.mxu0 0.0
    %719 = vmatprep.subr.mxu0 0.0
    %720 = vmatpush2.msra.mxu0 0.0
    %721 = vmatprep.subr.mxu0 0.0
    %722 = vmatpush2.msra.mxu0 0.0
    %723 = vmatprep.subr.mxu0 0.0
    %724 = vmatpush2.msra.mxu0 0.0
    %725 = vmatprep.subr.mxu0 0.0
    %726 = vmatpush2.msra.mxu0 0.0
    %727 = vmatprep.subr.mxu0 0.0
    %728 = vmatpush2.msra.mxu0 0.0
    %729 = vmatprep.subr.mxu0 0.0
    %730 = vmatpush2.msra.mxu0 0.0
    %731 = vmatprep.subr.mxu0 0.0
    %732 = vmatpush2.msra.mxu0 0.0
    %733 = vmatprep.subr.mxu0 0.0
    %734 = vmatpush2.msra.mxu0 0.0
    %735 = vmatprep.subr.mxu0 0.0
    %736 = vmatpush2.msra.mxu0 0.0
    %737 = vmatprep.subr.mxu0 0.0
    %738 = vmatpush2.msra.mxu0 0.0
    %739 = vmatprep.subr.mxu0 0.0
    %740 = vmatpush2.msra.mxu0 0.0
    %741 = vmatprep.subr.mxu0 0.0
    %742 = vmatpush2.msra.mxu0 0.0
    %743 = vmatprep.subr.mxu0 0.0
    %744 = vmatpush2.msra.mxu0 0.0
    %745 = vmatprep.mubr.f32.mxu0 0.0
    %746 = vmatmul.mubr.f32.gmra.mxu0 %v676
    %v747 = vpop.f32.mrf.mxu0
    %v748 = vadd.f32 0.0, %v747
    %v749 = vpop.f32.mrf.mxu0
    %750 = vmatprep.mubr.f32.mxu0 0.0
    %751 = vmatmul.mubr.f32.gmra.mxu0 %v679
    %v752 = vpop.f32.mrf.mxu0
    %v753 = vadd.f32 0.0, %v752
    %v754 = vpop.f32.mrf.mxu0
    %755 = vdwg.mxu0
    %758 = vrot.lane.b32.xlu0 %v124, 96
    %v759 = vpop.permute.xlu0 %758
    %760 = vrot.lane.b32.xlu0 %v130, 96
    %v761 = vpop.permute.xlu0 %760
    %v765 = vsel %vm50, %v661, 0
    %v768 = vsel %vm50, %v662, 0
    %770 = vmatprep.subr.mxu0 0.0
    %771 = vmatpush1.msra.mxu0 0.0
    %772 = vmatprep.subr.mxu0 0.0
    %773 = vmatpush1.msra.mxu0 0.0
    %774 = vmatprep.subr.mxu0 0.0
    %775 = vmatpush1.msra.mxu0 0.0
    %776 = vmatprep.subr.mxu0 0.0
    %777 = vmatpush1.msra.mxu0 0.0
    %778 = vmatprep.subr.mxu0 0.0
    %779 = vmatpush1.msra.mxu0 0.0
    %780 = vmatprep.subr.mxu0 0.0
    %781 = vmatpush1.msra.mxu0 0.0
    %782 = vmatprep.subr.mxu0 0.0
    %783 = vmatpush1.msra.mxu0 0.0
    %784 = vmatprep.subr.mxu0 0.0
    %785 = vmatpush1.msra.mxu0 0.0
    %786 = vmatprep.subr.mxu0 0.0
    %787 = vmatpush1.msra.mxu0 0.0
    %788 = vmatprep.subr.mxu0 0.0
    %789 = vmatpush1.msra.mxu0 0.0
    %790 = vmatprep.subr.mxu0 0.0
    %791 = vmatpush1.msra.mxu0 0.0
    %792 = vmatprep.subr.mxu0 0.0
    %793 = vmatpush1.msra.mxu0 0.0
    %794 = vmatprep.subr.mxu0 0.0
    %795 = vmatpush1.msra.mxu0 0.0
    %796 = vmatprep.subr.mxu0 0.0
    %797 = vmatpush1.msra.mxu0 0.0
    %798 = vmatprep.subr.mxu0 0.0
    %799 = vmatpush1.msra.mxu0 %v761
    %800 = vmatprep.subr.mxu0 0.0
    %801 = vmatpush1.msra.mxu0 %v759
    %802 = vmatprep.subr.mxu0 0.0
    %803 = vmatpush2.msra.mxu0 0.0
    %804 = vmatprep.subr.mxu0 0.0
    %805 = vmatpush2.msra.mxu0 0.0
    %806 = vmatprep.subr.mxu0 0.0
    %807 = vmatpush2.msra.mxu0 0.0
    %808 = vmatprep.subr.mxu0 0.0
    %809 = vmatpush2.msra.mxu0 0.0
    %810 = vmatprep.subr.mxu0 0.0
    %811 = vmatpush2.msra.mxu0 0.0
    %812 = vmatprep.subr.mxu0 0.0
    %813 = vmatpush2.msra.mxu0 0.0
    %814 = vmatprep.subr.mxu0 0.0
    %815 = vmatpush2.msra.mxu0 0.0
    %816 = vmatprep.subr.mxu0 0.0
    %817 = vmatpush2.msra.mxu0 0.0
    %818 = vmatprep.subr.mxu0 0.0
    %819 = vmatpush2.msra.mxu0 0.0
    %820 = vmatprep.subr.mxu0 0.0
    %821 = vmatpush2.msra.mxu0 0.0
    %822 = vmatprep.subr.mxu0 0.0
    %823 = vmatpush2.msra.mxu0 0.0
    %824 = vmatprep.subr.mxu0 0.0
    %825 = vmatpush2.msra.mxu0 0.0
    %826 = vmatprep.subr.mxu0 0.0
    %827 = vmatpush2.msra.mxu0 0.0
    %828 = vmatprep.subr.mxu0 0.0
    %829 = vmatpush2.msra.mxu0 0.0
    %830 = vmatprep.subr.mxu0 0.0
    %831 = vmatpush2.msra.mxu0 0.0
    %832 = vmatprep.subr.mxu0 0.0
    %833 = vmatpush2.msra.mxu0 0.0
    %834 = vmatprep.mubr.f32.mxu0 0.0
    %835 = vmatmul.mubr.f32.gmra.mxu0 %v765
    %v836 = vpop.f32.mrf.mxu0
    %v837 = vadd.f32 0.0, %v836
    %v838 = vpop.f32.mrf.mxu0
    %839 = vmatprep.mubr.f32.mxu0 0.0
    %840 = vmatmul.mubr.f32.gmra.mxu0 %v768
    %v841 = vpop.f32.mrf.mxu0
    %v842 = vadd.f32 0.0, %v841
    %v843 = vpop.f32.mrf.mxu0
    %844 = vdwg.mxu0
    %845 = vrot.lane.b32.xlu0 %v124, 64
    %v846 = vpop.permute.xlu0 %845
    %847 = vrot.lane.b32.xlu0 %v130, 64
    %v848 = vpop.permute.xlu0 %847
    %v852 = vsel %vm50, %v663, 0
    %v855 = vsel %vm50, %v664, 0
    %857 = vmatprep.subr.mxu0 0.0
    %858 = vmatpush1.msra.mxu0 0.0
    %859 = vmatprep.subr.mxu0 0.0
    %860 = vmatpush1.msra.mxu0 0.0
    %861 = vmatprep.subr.mxu0 0.0
    %862 = vmatpush1.msra.mxu0 0.0
    %863 = vmatprep.subr.mxu0 0.0
    %864 = vmatpush1.msra.mxu0 0.0
    %865 = vmatprep.subr.mxu0 0.0
    %866 = vmatpush1.msra.mxu0 0.0
    %867 = vmatprep.subr.mxu0 0.0
    %868 = vmatpush1.msra.mxu0 0.0
    %869 = vmatprep.subr.mxu0 0.0
    %870 = vmatpush1.msra.mxu0 0.0
    %871 = vmatprep.subr.mxu0 0.0
    %872 = vmatpush1.msra.mxu0 0.0
    %873 = vmatprep.subr.mxu0 0.0
    %874 = vmatpush1.msra.mxu0 0.0
    %875 = vmatprep.subr.mxu0 0.0
    %876 = vmatpush1.msra.mxu0 0.0
    %877 = vmatprep.subr.mxu0 0.0
    %878 = vmatpush1.msra.mxu0 0.0
    %879 = vmatprep.subr.mxu0 0.0
    %880 = vmatpush1.msra.mxu0 0.0
    %881 = vmatprep.subr.mxu0 0.0
    %882 = vmatpush1.msra.mxu0 0.0
    %883 = vmatprep.subr.mxu0 0.0
    %884 = vmatpush1.msra.mxu0 0.0
    %885 = vmatprep.subr.mxu0 0.0
    %886 = vmatpush1.msra.mxu0 %v848
    %887 = vmatprep.subr.mxu0 0.0
    %888 = vmatpush1.msra.mxu0 %v846
    %889 = vmatprep.subr.mxu0 0.0
    %890 = vmatpush2.msra.mxu0 0.0
    %891 = vmatprep.subr.mxu0 0.0
    %892 = vmatpush2.msra.mxu0 0.0
    %893 = vmatprep.subr.mxu0 0.0
    %894 = vmatpush2.msra.mxu0 0.0
    %895 = vmatprep.subr.mxu0 0.0
    %896 = vmatpush2.msra.mxu0 0.0
    %897 = vmatprep.subr.mxu0 0.0
    %898 = vmatpush2.msra.mxu0 0.0
    %899 = vmatprep.subr.mxu0 0.0
    %900 = vmatpush2.msra.mxu0 0.0
    %901 = vmatprep.subr.mxu0 0.0
    %902 = vmatpush2.msra.mxu0 0.0
    %903 = vmatprep.subr.mxu0 0.0
    %904 = vmatpush2.msra.mxu0 0.0
    %905 = vmatprep.subr.mxu0 0.0
    %906 = vmatpush2.msra.mxu0 0.0
    %907 = vmatprep.subr.mxu0 0.0
    %908 = vmatpush2.msra.mxu0 0.0
    %909 = vmatprep.subr.mxu0 0.0
    %910 = vmatpush2.msra.mxu0 0.0
    %911 = vmatprep.subr.mxu0 0.0
    %912 = vmatpush2.msra.mxu0 0.0
    %913 = vmatprep.subr.mxu0 0.0
    %914 = vmatpush2.msra.mxu0 0.0
    %915 = vmatprep.subr.mxu0 0.0
    %916 = vmatpush2.msra.mxu0 0.0
    %917 = vmatprep.subr.mxu0 0.0
    %918 = vmatpush2.msra.mxu0 0.0
    %919 = vmatprep.subr.mxu0 0.0
    %920 = vmatpush2.msra.mxu0 0.0
    %921 = vmatprep.mubr.f32.mxu0 0.0
    %922 = vmatmul.mubr.f32.gmra.mxu0 %v852
    %v923 = vpop.f32.mrf.mxu0
    %v924 = vadd.f32 0.0, %v923
    %v925 = vpop.f32.mrf.mxu0
    %926 = vmatprep.mubr.f32.mxu0 0.0
    %927 = vmatmul.mubr.f32.gmra.mxu0 %v855
    %v928 = vpop.f32.mrf.mxu0
    %v929 = vadd.f32 0.0, %v928
    %v930 = vpop.f32.mrf.mxu0
    %931 = vdwg.mxu0
    %932 = vrot.lane.b32.xlu0 %v124, 32
    %v933 = vpop.permute.xlu0 %932
    %934 = vrot.lane.b32.xlu0 %v130, 32
    %v935 = vpop.permute.xlu0 %934
    %v939 = vsel %vm50, %v665, 0
    %v942 = vsel %vm50, %v666, 0
    %944 = vmatprep.subr.mxu0 0.0
    %945 = vmatpush1.msra.mxu0 0.0
    %946 = vmatprep.subr.mxu0 0.0
    %947 = vmatpush1.msra.mxu0 0.0
    %948 = vmatprep.subr.mxu0 0.0
    %949 = vmatpush1.msra.mxu0 0.0
    %950 = vmatprep.subr.mxu0 0.0
    %951 = vmatpush1.msra.mxu0 0.0
    %952 = vmatprep.subr.mxu0 0.0
    %953 = vmatpush1.msra.mxu0 0.0
    %954 = vmatprep.subr.mxu0 0.0
    %955 = vmatpush1.msra.mxu0 0.0
    %956 = vmatprep.subr.mxu0 0.0
    %957 = vmatpush1.msra.mxu0 0.0
    %958 = vmatprep.subr.mxu0 0.0
    %959 = vmatpush1.msra.mxu0 0.0
    %960 = vmatprep.subr.mxu0 0.0
    %961 = vmatpush1.msra.mxu0 0.0
    %962 = vmatprep.subr.mxu0 0.0
    %963 = vmatpush1.msra.mxu0 0.0
    %964 = vmatprep.subr.mxu0 0.0
    %965 = vmatpush1.msra.mxu0 0.0
    %966 = vmatprep.subr.mxu0 0.0
    %967 = vmatpush1.msra.mxu0 0.0
    %968 = vmatprep.subr.mxu0 0.0
    %969 = vmatpush1.msra.mxu0 0.0
    %970 = vmatprep.subr.mxu0 0.0
    %971 = vmatpush1.msra.mxu0 0.0
    %972 = vmatprep.subr.mxu0 0.0
    %973 = vmatpush1.msra.mxu0 %v935
    %974 = vmatprep.subr.mxu0 0.0
    %975 = vmatpush1.msra.mxu0 %v933
    %976 = vmatprep.subr.mxu0 0.0
    %977 = vmatpush2.msra.mxu0 0.0
    %978 = vmatprep.subr.mxu0 0.0
    %979 = vmatpush2.msra.mxu0 0.0
    %980 = vmatprep.subr.mxu0 0.0
    %981 = vmatpush2.msra.mxu0 0.0
    %982 = vmatprep.subr.mxu0 0.0
    %983 = vmatpush2.msra.mxu0 0.0
    %984 = vmatprep.subr.mxu0 0.0
    %985 = vmatpush2.msra.mxu0 0.0
    %986 = vmatprep.subr.mxu0 0.0
    %987 = vmatpush2.msra.mxu0 0.0
    %988 = vmatprep.subr.mxu0 0.0
    %989 = vmatpush2.msra.mxu0 0.0
    %990 = vmatprep.subr.mxu0 0.0
    %991 = vmatpush2.msra.mxu0 0.0
    %992 = vmatprep.subr.mxu0 0.0
    %993 = vmatpush2.msra.mxu0 0.0
    %994 = vmatprep.subr.mxu0 0.0
    %995 = vmatpush2.msra.mxu0 0.0
    %996 = vmatprep.subr.mxu0 0.0
    %997 = vmatpush2.msra.mxu0 0.0
    %998 = vmatprep.subr.mxu0 0.0
    %999 = vmatpush2.msra.mxu0 0.0
    %1000 = vmatprep.subr.mxu0 0.0
    %1001 = vmatpush2.msra.mxu0 0.0
    %1002 = vmatprep.subr.mxu0 0.0
    %1003 = vmatpush2.msra.mxu0 0.0
    %1004 = vmatprep.subr.mxu0 0.0
    %1005 = vmatpush2.msra.mxu0 0.0
    %1006 = vmatprep.subr.mxu0 0.0
    %1007 = vmatpush2.msra.mxu0 0.0
    %1008 = vmatprep.mubr.f32.mxu0 0.0
    %1009 = vmatmul.mubr.f32.gmra.mxu0 %v939
    %v1010 = vpop.f32.mrf.mxu0
    %v1011 = vadd.f32 0.0, %v1010
    %v1012 = vpop.f32.mrf.mxu0
    %1013 = vmatprep.mubr.f32.mxu0 0.0
    %1014 = vmatmul.mubr.f32.gmra.mxu0 %v942
    %v1015 = vpop.f32.mrf.mxu0
    %v1016 = vadd.f32 0.0, %v1015
    %v1017 = vpop.f32.mrf.mxu0
    %1018 = vdwg.mxu0
    %v1020 = vsel %vm50, %v667, 0
    %v1023 = vsel %vm50, %v668, 0
    %1025 = vmatprep.subr.mxu0 0.0
    %1026 = vmatpush1.msra.mxu0 0.0
    %1027 = vmatprep.subr.mxu0 0.0
    %1028 = vmatpush1.msra.mxu0 0.0
    %1029 = vmatprep.subr.mxu0 0.0
    %1030 = vmatpush1.msra.mxu0 0.0
    %1031 = vmatprep.subr.mxu0 0.0
    %1032 = vmatpush1.msra.mxu0 0.0
    %1033 = vmatprep.subr.mxu0 0.0
    %1034 = vmatpush1.msra.mxu0 0.0
    %1035 = vmatprep.subr.mxu0 0.0
    %1036 = vmatpush1.msra.mxu0 0.0
    %1037 = vmatprep.subr.mxu0 0.0
    %1038 = vmatpush1.msra.mxu0 0.0
    %1039 = vmatprep.subr.mxu0 0.0
    %1040 = vmatpush1.msra.mxu0 0.0
    %1041 = vmatprep.subr.mxu0 0.0
    %1042 = vmatpush1.msra.mxu0 0.0
    %1043 = vmatprep.subr.mxu0 0.0
    %1044 = vmatpush1.msra.mxu0 0.0
    %1045 = vmatprep.subr.mxu0 0.0
    %1046 = vmatpush1.msra.mxu0 0.0
    %1047 = vmatprep.subr.mxu0 0.0
    %1048 = vmatpush1.msra.mxu0 0.0
    %1049 = vmatprep.subr.mxu0 0.0
    %1050 = vmatpush1.msra.mxu0 0.0
    %1051 = vmatprep.subr.mxu0 0.0
    %1052 = vmatpush1.msra.mxu0 0.0
    %1053 = vmatprep.subr.mxu0 0.0
    %1054 = vmatpush1.msra.mxu0 %v132
    %1055 = vmatprep.subr.mxu0 0.0
    %1056 = vmatpush1.msra.mxu0 %v126
    %1057 = vmatprep.subr.mxu0 0.0
    %1058 = vmatpush2.msra.mxu0 0.0
    %1059 = vmatprep.subr.mxu0 0.0
    %1060 = vmatpush2.msra.mxu0 0.0
    %1061 = vmatprep.subr.mxu0 0.0
    %1062 = vmatpush2.msra.mxu0 0.0
    %1063 = vmatprep.subr.mxu0 0.0
    %1064 = vmatpush2.msra.mxu0 0.0
    %1065 = vmatprep.subr.mxu0 0.0
    %1066 = vmatpush2.msra.mxu0 0.0
    %1067 = vmatprep.subr.mxu0 0.0
    %1068 = vmatpush2.msra.mxu0 0.0
    %1069 = vmatprep.subr.mxu0 0.0
    %1070 = vmatpush2.msra.mxu0 0.0
    %1071 = vmatprep.subr.mxu0 0.0
    %1072 = vmatpush2.msra.mxu0 0.0
    %1073 = vmatprep.subr.mxu0 0.0
    %1074 = vmatpush2.msra.mxu0 0.0
    %1075 = vmatprep.subr.mxu0 0.0
    %1076 = vmatpush2.msra.mxu0 0.0
    %1077 = vmatprep.subr.mxu0 0.0
    %1078 = vmatpush2.msra.mxu0 0.0
    %1079 = vmatprep.subr.mxu0 0.0
    %1080 = vmatpush2.msra.mxu0 0.0
    %1081 = vmatprep.subr.mxu0 0.0
    %1082 = vmatpush2.msra.mxu0 0.0
    %1083 = vmatprep.subr.mxu0 0.0
    %1084 = vmatpush2.msra.mxu0 0.0
    %1085 = vmatprep.subr.mxu0 0.0
    %1086 = vmatpush2.msra.mxu0 0.0
    %1087 = vmatprep.subr.mxu0 0.0
    %1088 = vmatpush2.msra.mxu0 0.0
    %1089 = vmatprep.mubr.f32.mxu0 0.0
    %1090 = vmatmul.mubr.f32.gmra.mxu0 %v1020
    %v1091 = vpop.f32.mrf.mxu0
    %v1092 = vadd.f32 0.0, %v1091
    %v1093 = vpop.f32.mrf.mxu0
    %1094 = vmatprep.mubr.f32.mxu0 0.0
    %1095 = vmatmul.mubr.f32.gmra.mxu0 %v1023
    %v1096 = vpop.f32.mrf.mxu0
    %v1097 = vadd.f32 0.0, %v1096
    %v1098 = vpop.f32.mrf.mxu0
    %1099 = vdwg.mxu0
    %1102 = vrot.lane.b32.xlu0 %v126, 96
    %v1103 = vpop.permute.xlu0 %1102
    %1104 = vrot.lane.b32.xlu0 %v132, 96
    %v1105 = vpop.permute.xlu0 %1104
    %v1109 = vsel %vm50, %v669, 0
    %v1112 = vsel %vm50, %v670, 0
    %1114 = vmatprep.subr.mxu0 0.0
    %1115 = vmatpush1.msra.mxu0 0.0
    %1116 = vmatprep.subr.mxu0 0.0
    %1117 = vmatpush1.msra.mxu0 0.0
    %1118 = vmatprep.subr.mxu0 0.0
    %1119 = vmatpush1.msra.mxu0 0.0
    %1120 = vmatprep.subr.mxu0 0.0
    %1121 = vmatpush1.msra.mxu0 0.0
    %1122 = vmatprep.subr.mxu0 0.0
    %1123 = vmatpush1.msra.mxu0 0.0
    %1124 = vmatprep.subr.mxu0 0.0
    %1125 = vmatpush1.msra.mxu0 0.0
    %1126 = vmatprep.subr.mxu0 0.0
    %1127 = vmatpush1.msra.mxu0 0.0
    %1128 = vmatprep.subr.mxu0 0.0
    %1129 = vmatpush1.msra.mxu0 0.0
    %1130 = vmatprep.subr.mxu0 0.0
    %1131 = vmatpush1.msra.mxu0 0.0
    %1132 = vmatprep.subr.mxu0 0.0
    %1133 = vmatpush1.msra.mxu0 0.0
    %1134 = vmatprep.subr.mxu0 0.0
    %1135 = vmatpush1.msra.mxu0 0.0
    %1136 = vmatprep.subr.mxu0 0.0
    %1137 = vmatpush1.msra.mxu0 0.0
    %1138 = vmatprep.subr.mxu0 0.0
    %1139 = vmatpush1.msra.mxu0 0.0
    %1140 = vmatprep.subr.mxu0 0.0
    %1141 = vmatpush1.msra.mxu0 0.0
    %1142 = vmatprep.subr.mxu0 0.0
    %1143 = vmatpush1.msra.mxu0 %v1105
    %1144 = vmatprep.subr.mxu0 0.0
    %1145 = vmatpush1.msra.mxu0 %v1103
    %1146 = vmatprep.subr.mxu0 0.0
    %1147 = vmatpush2.msra.mxu0 0.0
    %1148 = vmatprep.subr.mxu0 0.0
    %1149 = vmatpush2.msra.mxu0 0.0
    %1150 = vmatprep.subr.mxu0 0.0
    %1151 = vmatpush2.msra.mxu0 0.0
    %1152 = vmatprep.subr.mxu0 0.0
    %1153 = vmatpush2.msra.mxu0 0.0
    %1154 = vmatprep.subr.mxu0 0.0
    %1155 = vmatpush2.msra.mxu0 0.0
    %1156 = vmatprep.subr.mxu0 0.0
    %1157 = vmatpush2.msra.mxu0 0.0
    %1158 = vmatprep.subr.mxu0 0.0
    %1159 = vmatpush2.msra.mxu0 0.0
    %1160 = vmatprep.subr.mxu0 0.0
    %1161 = vmatpush2.msra.mxu0 0.0
    %1162 = vmatprep.subr.mxu0 0.0
    %1163 = vmatpush2.msra.mxu0 0.0
    %1164 = vmatprep.subr.mxu0 0.0
    %1165 = vmatpush2.msra.mxu0 0.0
    %1166 = vmatprep.subr.mxu0 0.0
    %1167 = vmatpush2.msra.mxu0 0.0
    %1168 = vmatprep.subr.mxu0 0.0
    %1169 = vmatpush2.msra.mxu0 0.0
    %1170 = vmatprep.subr.mxu0 0.0
    %1171 = vmatpush2.msra.mxu0 0.0
    %1172 = vmatprep.subr.mxu0 0.0
    %1173 = vmatpush2.msra.mxu0 0.0
    %1174 = vmatprep.subr.mxu0 0.0
    %1175 = vmatpush2.msra.mxu0 0.0
    %1176 = vmatprep.subr.mxu0 0.0
    %1177 = vmatpush2.msra.mxu0 0.0
    %1178 = vmatprep.mubr.f32.mxu0 0.0
    %1179 = vmatmul.mubr.f32.gmra.mxu0 %v1109
    %v1180 = vpop.f32.mrf.mxu0
    %v1181 = vadd.f32 0.0, %v1180
    %v1182 = vpop.f32.mrf.mxu0
    %1183 = vmatprep.mubr.f32.mxu0 0.0
    %1184 = vmatmul.mubr.f32.gmra.mxu0 %v1112
    %v1185 = vpop.f32.mrf.mxu0
    %v1186 = vadd.f32 0.0, %v1185
    %v1187 = vpop.f32.mrf.mxu0
    %1188 = vdwg.mxu0
    %1189 = vrot.lane.b32.xlu0 %v126, 64
    %v1190 = vpop.permute.xlu0 %1189
    %1191 = vrot.lane.b32.xlu0 %v132, 64
    %v1192 = vpop.permute.xlu0 %1191
    %v1196 = vsel %vm50, %v671, 0
    %v1199 = vsel %vm50, %v672, 0
    %1201 = vmatprep.subr.mxu0 0.0
    %1202 = vmatpush1.msra.mxu0 0.0
    %1203 = vmatprep.subr.mxu0 0.0
    %1204 = vmatpush1.msra.mxu0 0.0
    %1205 = vmatprep.subr.mxu0 0.0
    %1206 = vmatpush1.msra.mxu0 0.0
    %1207 = vmatprep.subr.mxu0 0.0
    %1208 = vmatpush1.msra.mxu0 0.0
    %1209 = vmatprep.subr.mxu0 0.0
    %1210 = vmatpush1.msra.mxu0 0.0
    %1211 = vmatprep.subr.mxu0 0.0
    %1212 = vmatpush1.msra.mxu0 0.0
    %1213 = vmatprep.subr.mxu0 0.0
    %1214 = vmatpush1.msra.mxu0 0.0
    %1215 = vmatprep.subr.mxu0 0.0
    %1216 = vmatpush1.msra.mxu0 0.0
    %1217 = vmatprep.subr.mxu0 0.0
    %1218 = vmatpush1.msra.mxu0 0.0
    %1219 = vmatprep.subr.mxu0 0.0
    %1220 = vmatpush1.msra.mxu0 0.0
    %1221 = vmatprep.subr.mxu0 0.0
    %1222 = vmatpush1.msra.mxu0 0.0
    %1223 = vmatprep.subr.mxu0 0.0
    %1224 = vmatpush1.msra.mxu0 0.0
    %1225 = vmatprep.subr.mxu0 0.0
    %1226 = vmatpush1.msra.mxu0 0.0
    %1227 = vmatprep.subr.mxu0 0.0
    %1228 = vmatpush1.msra.mxu0 0.0
    %1229 = vmatprep.subr.mxu0 0.0
    %1230 = vmatpush1.msra.mxu0 %v1192
    %1231 = vmatprep.subr.mxu0 0.0
    %1232 = vmatpush1.msra.mxu0 %v1190
    %1233 = vmatprep.subr.mxu0 0.0
    %1234 = vmatpush2.msra.mxu0 0.0
    %1235 = vmatprep.subr.mxu0 0.0
    %1236 = vmatpush2.msra.mxu0 0.0
    %1237 = vmatprep.subr.mxu0 0.0
    %1238 = vmatpush2.msra.mxu0 0.0
    %1239 = vmatprep.subr.mxu0 0.0
    %1240 = vmatpush2.msra.mxu0 0.0
    %1241 = vmatprep.subr.mxu0 0.0
    %1242 = vmatpush2.msra.mxu0 0.0
    %1243 = vmatprep.subr.mxu0 0.0
    %1244 = vmatpush2.msra.mxu0 0.0
    %1245 = vmatprep.subr.mxu0 0.0
    %1246 = vmatpush2.msra.mxu0 0.0
    %1247 = vmatprep.subr.mxu0 0.0
    %1248 = vmatpush2.msra.mxu0 0.0
    %1249 = vmatprep.subr.mxu0 0.0
    %1250 = vmatpush2.msra.mxu0 0.0
    %1251 = vmatprep.subr.mxu0 0.0
    %1252 = vmatpush2.msra.mxu0 0.0
    %1253 = vmatprep.subr.mxu0 0.0
    %1254 = vmatpush2.msra.mxu0 0.0
    %1255 = vmatprep.subr.mxu0 0.0
    %1256 = vmatpush2.msra.mxu0 0.0
    %1257 = vmatprep.subr.mxu0 0.0
    %1258 = vmatpush2.msra.mxu0 0.0
    %1259 = vmatprep.subr.mxu0 0.0
    %1260 = vmatpush2.msra.mxu0 0.0
    %1261 = vmatprep.subr.mxu0 0.0
    %1262 = vmatpush2.msra.mxu0 0.0
    %1263 = vmatprep.subr.mxu0 0.0
    %1264 = vmatpush2.msra.mxu0 0.0
    %1265 = vmatprep.mubr.f32.mxu0 0.0
    %1266 = vmatmul.mubr.f32.gmra.mxu0 %v1196
    %v1267 = vpop.f32.mrf.mxu0
    %v1268 = vadd.f32 0.0, %v1267
    %v1269 = vpop.f32.mrf.mxu0
    %1270 = vmatprep.mubr.f32.mxu0 0.0
    %1271 = vmatmul.mubr.f32.gmra.mxu0 %v1199
    %v1272 = vpop.f32.mrf.mxu0
    %v1273 = vadd.f32 0.0, %v1272
    %v1274 = vpop.f32.mrf.mxu0
    %1275 = vdwg.mxu0
    %1276 = vrot.lane.b32.xlu0 %v126, 32
    %v1277 = vpop.permute.xlu0 %1276
    %1278 = vrot.lane.b32.xlu0 %v132, 32
    %v1279 = vpop.permute.xlu0 %1278
    %v1283 = vsel %vm50, %v673, 0
    %v1286 = vsel %vm50, %v674, 0
    %1288 = vmatprep.subr.mxu0 0.0
    %1289 = vmatpush1.msra.mxu0 0.0
    %1290 = vmatprep.subr.mxu0 0.0
    %1291 = vmatpush1.msra.mxu0 0.0
    %1292 = vmatprep.subr.mxu0 0.0
    %1293 = vmatpush1.msra.mxu0 0.0
    %1294 = vmatprep.subr.mxu0 0.0
    %1295 = vmatpush1.msra.mxu0 0.0
    %1296 = vmatprep.subr.mxu0 0.0
    %1297 = vmatpush1.msra.mxu0 0.0
    %1298 = vmatprep.subr.mxu0 0.0
    %1299 = vmatpush1.msra.mxu0 0.0
    %1300 = vmatprep.subr.mxu0 0.0
    %1301 = vmatpush1.msra.mxu0 0.0
    %1302 = vmatprep.subr.mxu0 0.0
    %1303 = vmatpush1.msra.mxu0 0.0
    %1304 = vmatprep.subr.mxu0 0.0
    %1305 = vmatpush1.msra.mxu0 0.0
    %1306 = vmatprep.subr.mxu0 0.0
    %1307 = vmatpush1.msra.mxu0 0.0
    %1308 = vmatprep.subr.mxu0 0.0
    %1309 = vmatpush1.msra.mxu0 0.0
    %1310 = vmatprep.subr.mxu0 0.0
    %1311 = vmatpush1.msra.mxu0 0.0
    %1312 = vmatprep.subr.mxu0 0.0
    %1313 = vmatpush1.msra.mxu0 0.0
    %1314 = vmatprep.subr.mxu0 0.0
    %1315 = vmatpush1.msra.mxu0 0.0
    %1316 = vmatprep.subr.mxu0 0.0
    %1317 = vmatpush1.msra.mxu0 %v1279
    %1318 = vmatprep.subr.mxu0 0.0
    %1319 = vmatpush1.msra.mxu0 %v1277
    %1320 = vmatprep.subr.mxu0 0.0
    %1321 = vmatpush2.msra.mxu0 0.0
    %1322 = vmatprep.subr.mxu0 0.0
    %1323 = vmatpush2.msra.mxu0 0.0
    %1324 = vmatprep.subr.mxu0 0.0
    %1325 = vmatpush2.msra.mxu0 0.0
    %1326 = vmatprep.subr.mxu0 0.0
    %1327 = vmatpush2.msra.mxu0 0.0
    %1328 = vmatprep.subr.mxu0 0.0
    %1329 = vmatpush2.msra.mxu0 0.0
    %1330 = vmatprep.subr.mxu0 0.0
    %1331 = vmatpush2.msra.mxu0 0.0
    %1332 = vmatprep.subr.mxu0 0.0
    %1333 = vmatpush2.msra.mxu0 0.0
    %1334 = vmatprep.subr.mxu0 0.0
    %1335 = vmatpush2.msra.mxu0 0.0
    %1336 = vmatprep.subr.mxu0 0.0
    %1337 = vmatpush2.msra.mxu0 0.0
    %1338 = vmatprep.subr.mxu0 0.0
    %1339 = vmatpush2.msra.mxu0 0.0
    %1340 = vmatprep.subr.mxu0 0.0
    %1341 = vmatpush2.msra.mxu0 0.0
    %1342 = vmatprep.subr.mxu0 0.0
    %1343 = vmatpush2.msra.mxu0 0.0
    %1344 = vmatprep.subr.mxu0 0.0
    %1345 = vmatpush2.msra.mxu0 0.0
    %1346 = vmatprep.subr.mxu0 0.0
    %1347 = vmatpush2.msra.mxu0 0.0
    %1348 = vmatprep.subr.mxu0 0.0
    %1349 = vmatpush2.msra.mxu0 0.0
    %1350 = vmatprep.subr.mxu0 0.0
    %1351 = vmatpush2.msra.mxu0 0.0
    %1352 = vmatprep.mubr.f32.mxu0 0.0
    %1353 = vmatmul.mubr.f32.gmra.mxu0 %v1283
    %v1354 = vpop.f32.mrf.mxu0
    %v1355 = vadd.f32 0.0, %v1354
    %v1356 = vpop.f32.mrf.mxu0
    %1357 = vmatprep.mubr.f32.mxu0 0.0
    %1358 = vmatmul.mubr.f32.gmra.mxu0 %v1286
    %v1359 = vpop.f32.mrf.mxu0
    %v1360 = vadd.f32 0.0, %v1359
    %v1361 = vpop.f32.mrf.mxu0
    %1362 = vdwg.mxu0
    %1365 = vrot.lane.b32.xlu0 %v837, 32
    %v1366 = vpop.permute.xlu0 %1365
    %1367 = vrot.lane.b32.xlu0 %v842, 32
    %v1368 = vpop.permute.xlu0 %1367
    %1373 = vrot.lane.b32.xlu0 %v924, 64
    %v1374 = vpop.permute.xlu0 %1373
    %1375 = vrot.lane.b32.xlu0 %v929, 64
    %v1376 = vpop.permute.xlu0 %1375
    %1381 = vrot.lane.b32.xlu0 %v1011, 96
    %v1382 = vpop.permute.xlu0 %1381
    %1383 = vrot.lane.b32.xlu0 %v1016, 96
    %v1384 = vpop.permute.xlu0 %1383
    %1389 = vrot.lane.b32.xlu0 %v1181, 32
    %v1390 = vpop.permute.xlu0 %1389
    %1391 = vrot.lane.b32.xlu0 %v1186, 32
    %v1392 = vpop.permute.xlu0 %1391
    %1397 = vrot.lane.b32.xlu0 %v1268, 64
    %v1398 = vpop.permute.xlu0 %1397
    %1399 = vrot.lane.b32.xlu0 %v1273, 64
    %v1400 = vpop.permute.xlu0 %1399
    %1405 = vrot.lane.b32.xlu0 %v1355, 96
    %v1406 = vpop.permute.xlu0 %1405
    %1407 = vrot.lane.b32.xlu0 %v1360, 96
    %v1408 = vpop.permute.xlu0 %1407
    %vm1411 = vcmask 261120
    %v1412 = vsel %vm1411, %v748, %v1366
    %v1413 = vsel %vm1411, %v753, %v1368
    %vm1414 = vcmask 523264
    %v1415 = vsel %vm1414, %v1412, %v1374
    %v1416 = vsel %vm1414, %v1413, %v1376
    %vm1417 = vcmask 785408
    %v1418 = vsel %vm1417, %v1415, %v1382
    %v1419 = vsel %vm1417, %v1416, %v1384
    %v1420 = vsel %vm1411, %v1092, %v1390
    %v1421 = vsel %vm1411, %v1097, %v1392
    %v1422 = vsel %vm1414, %v1420, %v1398
    %v1423 = vsel %vm1414, %v1421, %v1400
    %v1424 = vsel %vm1417, %v1422, %v1406
    %v1425 = vsel %vm1417, %v1423, %v1408
    %v1427 = vlaneseq
    %v1428 = vshrl.u32 %v1427, 7
    %v1429 = vsub.s32 0, %v1428
    %v1430 = vrot.slane %v49, %v1429
    %v1431 = vlaneseq
    %v1432 = vshrl.u32 %v1431, 7
    %v1433 = vsub.s32 1, %v1432
    %v1434 = vrot.slane %v49, %v1433
    %v1437 = vadd.f32 %v1418, %v1430
    %v1438 = vadd.f32 %v1424, %v1434
    %v1439 = vadd.f32 %v1419, %v1430
    %v1440 = vadd.f32 %v1425, %v1434
    %v1441 = vmax.f32 %v1437, 0.0
    %v1442 = vmax.f32 %v1438, 0.0
    %v1443 = vmax.f32 %v1439, 0.0
    %v1444 = vmax.f32 %v1440, 0.0
    %v1445 = vld [vmem:[%s4] sm:$0xff]
    %v1446 = vld [vmem:[%s4 + $0x8] sm:$0xff]
    %v1447 = vld [vmem:[%s4 + $0x10] sm:$0xff]
    %v1448 = vld [vmem:[%s4 + $0x18] sm:$0xff]
    %v1449 = vld [vmem:[%s4 + $0x20] sm:$0xff]
    %v1450 = vld [vmem:[%s4 + $0x28] sm:$0xff]
    %v1451 = vld [vmem:[%s4 + $0x30] sm:$0xff]
    %v1452 = vld [vmem:[%s4 + $0x38] sm:$0xff]
    %v1453 = vld [vmem:[%s4 + $0x40] sm:$0xff]
    %v1454 = vld [vmem:[%s4 + $0x48] sm:$0xff]
    %v1455 = vld [vmem:[%s4 + $0x50] sm:$0xff]
    %v1456 = vld [vmem:[%s4 + $0x58] sm:$0xff]
    %v1457 = vld [vmem:[%s4 + $0x60] sm:$0xff]
    %v1458 = vld [vmem:[%s4 + $0x68] sm:$0xff]
    %v1459 = vld [vmem:[%s4 + $0x70] sm:$0xff]
    %v1460 = vld [vmem:[%s4 + $0x78] sm:$0xff]
    %v1461 = vld [vmem:[%s4 + $0x80] sm:$0xff]
    %v1462 = vld [vmem:[%s4 + $0x88] sm:$0xff]
    %v1463 = vld [vmem:[%s4 + $0x90] sm:$0xff]
    %v1464 = vld [vmem:[%s4 + $0x98] sm:$0xff]
    %v1465 = vld [vmem:[%s4 + $0xa0] sm:$0xff]
    %v1466 = vld [vmem:[%s4 + $0xa8] sm:$0xff]
    %v1467 = vld [vmem:[%s4 + $0xb0] sm:$0xff]
    %v1468 = vld [vmem:[%s4 + $0xb8] sm:$0xff]
    %v1469 = vld [vmem:[%s4 + $0xc0] sm:$0xff]
    %v1470 = vld [vmem:[%s4 + $0xc8] sm:$0xff]
    %v1471 = vld [vmem:[%s4 + $0xd0] sm:$0xff]
    %v1472 = vld [vmem:[%s4 + $0xd8] sm:$0xff]
    %v1473 = vld [vmem:[%s4 + $0xe0] sm:$0xff]
    %v1474 = vld [vmem:[%s4 + $0xe8] sm:$0xff]
    %v1475 = vld [vmem:[%s4 + $0xf0] sm:$0xff]
    %v1476 = vld [vmem:[%s4 + $0xf8] sm:$0xff]
    %v1477 = vld [vmem:[%s5] sm:$0xff]
    %v1478 = vld [vmem:[%s5 + $0x8] sm:$0xff]
    %v1479 = vld [vmem:[%s5 + $0x10] sm:$0xff]
    %v1480 = vld [vmem:[%s5 + $0x18] sm:$0xff]
    %v1481 = vld [vmem:[%s5 + $0x20] sm:$0xff]
    %v1482 = vld [vmem:[%s5 + $0x28] sm:$0xff]
    %v1483 = vld [vmem:[%s5 + $0x30] sm:$0xff]
    %v1484 = vld [vmem:[%s5 + $0x38] sm:$0xff]
    %v1485 = vld [vmem:[%s5 + $0x40] sm:$0xff]
    %v1486 = vld [vmem:[%s5 + $0x48] sm:$0xff]
    %v1487 = vld [vmem:[%s5 + $0x50] sm:$0xff]
    %v1488 = vld [vmem:[%s5 + $0x58] sm:$0xff]
    %v1489 = vld [vmem:[%s5 + $0x60] sm:$0xff]
    %v1490 = vld [vmem:[%s5 + $0x68] sm:$0xff]
    %v1491 = vld [vmem:[%s5 + $0x70] sm:$0xff]
    %v1492 = vld [vmem:[%s5 + $0x78] sm:$0xff]
    %v1493 = vld [vmem:[%s5 + $0x80] sm:$0xff]
    %v1494 = vld [vmem:[%s5 + $0x88] sm:$0xff]
    %v1495 = vld [vmem:[%s5 + $0x90] sm:$0xff]
    %v1496 = vld [vmem:[%s5 + $0x98] sm:$0xff]
    %v1497 = vld [vmem:[%s5 + $0xa0] sm:$0xff]
    %v1498 = vld [vmem:[%s5 + $0xa8] sm:$0xff]
    %v1499 = vld [vmem:[%s5 + $0xb0] sm:$0xff]
    %v1500 = vld [vmem:[%s5 + $0xb8] sm:$0xff]
    %v1501 = vld [vmem:[%s5 + $0xc0] sm:$0xff]
    %v1502 = vld [vmem:[%s5 + $0xc8] sm:$0xff]
    %v1503 = vld [vmem:[%s5 + $0xd0] sm:$0xff]
    %v1504 = vld [vmem:[%s5 + $0xd8] sm:$0xff]
    %v1505 = vld [vmem:[%s5 + $0xe0] sm:$0xff]
    %v1506 = vld [vmem:[%s5 + $0xe8] sm:$0xff]
    %v1507 = vld [vmem:[%s5 + $0xf0] sm:$0xff]
    %v1508 = vld [vmem:[%s5 + $0xf8] sm:$0xff]
    %v1509 = vld [vmem:[%s6] sm:$0x1]
    %1510 = vmatprep.subr.mxu0 0.0
    %1511 = vmatpush1.msra.mxu0 %v1460
    %1512 = vmatprep.subr.mxu0 0.0
    %1513 = vmatpush1.msra.mxu0 %v1459
    %1514 = vmatprep.subr.mxu0 0.0
    %1515 = vmatpush1.msra.mxu0 %v1458
    %1516 = vmatprep.subr.mxu0 0.0
    %1517 = vmatpush1.msra.mxu0 %v1457
    %1518 = vmatprep.subr.mxu0 0.0
    %1519 = vmatpush1.msra.mxu0 %v1456
    %1520 = vmatprep.subr.mxu0 0.0
    %1521 = vmatpush1.msra.mxu0 %v1455
    %1522 = vmatprep.subr.mxu0 0.0
    %1523 = vmatpush1.msra.mxu0 %v1454
    %1524 = vmatprep.subr.mxu0 0.0
    %1525 = vmatpush1.msra.mxu0 %v1453
    %1526 = vmatprep.subr.mxu0 0.0
    %1527 = vmatpush1.msra.mxu0 %v1452
    %1528 = vmatprep.subr.mxu0 0.0
    %1529 = vmatpush1.msra.mxu0 %v1451
    %1530 = vmatprep.subr.mxu0 0.0
    %1531 = vmatpush1.msra.mxu0 %v1450
    %1532 = vmatprep.subr.mxu0 0.0
    %1533 = vmatpush1.msra.mxu0 %v1449
    %1534 = vmatprep.subr.mxu0 0.0
    %1535 = vmatpush1.msra.mxu0 %v1448
    %1536 = vmatprep.subr.mxu0 0.0
    %1537 = vmatpush1.msra.mxu0 %v1447
    %1538 = vmatprep.subr.mxu0 0.0
    %1539 = vmatpush1.msra.mxu0 %v1446
    %1540 = vmatprep.subr.mxu0 0.0
    %1541 = vmatpush1.msra.mxu0 %v1445
    %1542 = vmatprep.subr.mxu0 0.0
    %1543 = vmatpush2.msra.mxu0 %v1476
    %1544 = vmatprep.subr.mxu0 0.0
    %1545 = vmatpush2.msra.mxu0 %v1475
    %1546 = vmatprep.subr.mxu0 0.0
    %1547 = vmatpush2.msra.mxu0 %v1474
    %1548 = vmatprep.subr.mxu0 0.0
    %1549 = vmatpush2.msra.mxu0 %v1473
    %1550 = vmatprep.subr.mxu0 0.0
    %1551 = vmatpush2.msra.mxu0 %v1472
    %1552 = vmatprep.subr.mxu0 0.0
    %1553 = vmatpush2.msra.mxu0 %v1471
    %1554 = vmatprep.subr.mxu0 0.0
    %1555 = vmatpush2.msra.mxu0 %v1470
    %1556 = vmatprep.subr.mxu0 0.0
    %1557 = vmatpush2.msra.mxu0 %v1469
    %1558 = vmatprep.subr.mxu0 0.0
    %1559 = vmatpush2.msra.mxu0 %v1468
    %1560 = vmatprep.subr.mxu0 0.0
    %1561 = vmatpush2.msra.mxu0 %v1467
    %1562 = vmatprep.subr.mxu0 0.0
    %1563 = vmatpush2.msra.mxu0 %v1466
    %1564 = vmatprep.subr.mxu0 0.0
    %1565 = vmatpush2.msra.mxu0 %v1465
    %1566 = vmatprep.subr.mxu0 0.0
    %1567 = vmatpush2.msra.mxu0 %v1464
    %1568 = vmatprep.subr.mxu0 0.0
    %1569 = vmatpush2.msra.mxu0 %v1463
    %1570 = vmatprep.subr.mxu0 0.0
    %1571 = vmatpush2.msra.mxu0 %v1462
    %1572 = vmatprep.subr.mxu0 0.0
    %1573 = vmatpush2.msra.mxu0 %v1461
    %1574 = vmatprep.mubr.f32.mxu0 %v1442
    %1575 = vmatmul.mubr.f32.gmra.mxu0 %v1441
    %v1576 = vpop.f32.mrf.mxu0
    %v1577 = vadd.f32 0.0, %v1576
    %v1578 = vpop.f32.mrf.mxu0
    %1579 = vmatprep.mubr.f32.mxu0 %v1444
    %1580 = vmatmul.mubr.f32.gmra.mxu0 %v1443
    %v1581 = vpop.f32.mrf.mxu0
    %v1582 = vadd.f32 0.0, %v1581
    %v1583 = vpop.f32.mrf.mxu0
    %1584 = vdwg.mxu0
    %1585 = vmatprep.subr.mxu0 0.0
    %1586 = vmatpush1.msra.mxu0 %v1492
    %1587 = vmatprep.subr.mxu0 0.0
    %1588 = vmatpush1.msra.mxu0 %v1491
    %1589 = vmatprep.subr.mxu0 0.0
    %1590 = vmatpush1.msra.mxu0 %v1490
    %1591 = vmatprep.subr.mxu0 0.0
    %1592 = vmatpush1.msra.mxu0 %v1489
    %1593 = vmatprep.subr.mxu0 0.0
    %1594 = vmatpush1.msra.mxu0 %v1488
    %1595 = vmatprep.subr.mxu0 0.0
    %1596 = vmatpush1.msra.mxu0 %v1487
    %1597 = vmatprep.subr.mxu0 0.0
    %1598 = vmatpush1.msra.mxu0 %v1486
    %1599 = vmatprep.subr.mxu0 0.0
    %1600 = vmatpush1.msra.mxu0 %v1485
    %1601 = vmatprep.subr.mxu0 0.0
    %1602 = vmatpush1.msra.mxu0 %v1484
    %1603 = vmatprep.subr.mxu0 0.0
    %1604 = vmatpush1.msra.mxu0 %v1483
    %1605 = vmatprep.subr.mxu0 0.0
    %1606 = vmatpush1.msra.mxu0 %v1482
    %1607 = vmatprep.subr.mxu0 0.0
    %1608 = vmatpush1.msra.mxu0 %v1481
    %1609 = vmatprep.subr.mxu0 0.0
    %1610 = vmatpush1.msra.mxu0 %v1480
    %1611 = vmatprep.subr.mxu0 0.0
    %1612 = vmatpush1.msra.mxu0 %v1479
    %1613 = vmatprep.subr.mxu0 0.0
    %1614 = vmatpush1.msra.mxu0 %v1478
    %1615 = vmatprep.subr.mxu0 0.0
    %1616 = vmatpush1.msra.mxu0 %v1477
    %1617 = vmatprep.subr.mxu0 0.0
    %1618 = vmatpush2.msra.mxu0 %v1508
    %1619 = vmatprep.subr.mxu0 0.0
    %1620 = vmatpush2.msra.mxu0 %v1507
    %1621 = vmatprep.subr.mxu0 0.0
    %1622 = vmatpush2.msra.mxu0 %v1506
    %1623 = vmatprep.subr.mxu0 0.0
    %1624 = vmatpush2.msra.mxu0 %v1505
    %1625 = vmatprep.subr.mxu0 0.0
    %1626 = vmatpush2.msra.mxu0 %v1504
    %1627 = vmatprep.subr.mxu0 0.0
    %1628 = vmatpush2.msra.mxu0 %v1503
    %1629 = vmatprep.subr.mxu0 0.0
    %1630 = vmatpush2.msra.mxu0 %v1502
    %1631 = vmatprep.subr.mxu0 0.0
    %1632 = vmatpush2.msra.mxu0 %v1501
    %1633 = vmatprep.subr.mxu0 0.0
    %1634 = vmatpush2.msra.mxu0 %v1500
    %1635 = vmatprep.subr.mxu0 0.0
    %1636 = vmatpush2.msra.mxu0 %v1499
    %1637 = vmatprep.subr.mxu0 0.0
    %1638 = vmatpush2.msra.mxu0 %v1498
    %1639 = vmatprep.subr.mxu0 0.0
    %1640 = vmatpush2.msra.mxu0 %v1497
    %1641 = vmatprep.subr.mxu0 0.0
    %1642 = vmatpush2.msra.mxu0 %v1496
    %1643 = vmatprep.subr.mxu0 0.0
    %1644 = vmatpush2.msra.mxu0 %v1495
    %1645 = vmatprep.subr.mxu0 0.0
    %1646 = vmatpush2.msra.mxu0 %v1494
    %1647 = vmatprep.subr.mxu0 0.0
    %1648 = vmatpush2.msra.mxu0 %v1493
    %1649 = vmatprep.mubr.f32.mxu0 %v1442
    %1650 = vmatmul.mubr.f32.gmra.mxu0 %v1441
    %v1651 = vpop.f32.mrf.mxu0
    %v1652 = vadd.f32 0.0, %v1651
    %v1653 = vpop.f32.mrf.mxu0
    %1654 = vmatprep.mubr.f32.mxu0 %v1444
    %1655 = vmatmul.mubr.f32.gmra.mxu0 %v1443
    %v1656 = vpop.f32.mrf.mxu0
    %v1657 = vadd.f32 0.0, %v1656
    %v1658 = vpop.f32.mrf.mxu0
    %1659 = vdwg.mxu0
    %1660 = vxpose.xlu0.b32.start [1/16] %v1652, 128
    %1661 = vxpose.xlu0.b32.cont [2/16] %v1657, 128
    %1662 = vxpose.xlu0.b32.cont [3/16] 0.0, 128
    %1663 = vxpose.xlu0.b32.cont [4/16] 0.0, 128
    %1664 = vxpose.xlu0.b32.cont [5/16] 0.0, 128
    %1665 = vxpose.xlu0.b32.cont [6/16] 0.0, 128
    %1666 = vxpose.xlu0.b32.cont [7/16] 0.0, 128
    %1667 = vxpose.xlu0.b32.cont [8/16] 0.0, 128
    %1668 = vxpose.xlu0.b32.cont [9/16] 0.0, 128
    %1669 = vxpose.xlu0.b32.cont [10/16] 0.0, 128
    %1670 = vxpose.xlu0.b32.cont [11/16] 0.0, 128
    %1671 = vxpose.xlu0.b32.cont [12/16] 0.0, 128
    %1672 = vxpose.xlu0.b32.cont [13/16] 0.0, 128
    %1673 = vxpose.xlu0.b32.cont [14/16] 0.0, 128
    %1674 = vxpose.xlu0.b32.cont [15/16] 0.0, 128
    %1675 = vxpose.xlu0.b32.end [16/16] 0.0, 128
    %v1676 = vpop.trf.xlu0
    %v1677 = vpop.trf.xlu0
    %v1678 = vpop.trf.xlu0
    %v1679 = vpop.trf.xlu0
    %v1680 = vpop.trf.xlu0
    %v1681 = vpop.trf.xlu0
    %v1682 = vpop.trf.xlu0
    %v1683 = vpop.trf.xlu0
    %v1684 = vpop.trf.xlu0
    %v1685 = vpop.trf.xlu0
    %v1686 = vpop.trf.xlu0
    %v1687 = vpop.trf.xlu0
    %v1688 = vpop.trf.xlu0
    %v1689 = vpop.trf.xlu0
    %v1690 = vpop.trf.xlu0
    %v1691 = vpop.trf.xlu0
    %v1692 = vlaneseq
    %v1693 = vshrl.u32 %v1692, 7
    %v1694 = vsub.s32 0, %v1693
    %v1695 = vrot.slane %v1676, %v1694
    %1697 = vbcast.lane.b32.xlu0 %v1695, 256
    %v1698 = vpop.permute.xlu0 %1697
    %s1700 = sor.u32 256, 8
    %1701 = vbcast.lane.b32.xlu0 %v1695, %s1700
    %v1702 = vpop.permute.xlu0 %1701
    %v1703 = vlaneseq
    %v1704 = vshrl.u32 %v1703, 7
    %v1705 = vsub.s32 1, %v1704
    %v1706 = vrot.slane %v1676, %v1705
    %v1707 = vadd.f32 %v1698, %v1706
    %v1708 = vadd.f32 %v1702, %v1706
    %vm1709 = vcmp.ge.f32.partialorder %v1707, 0.0
    %vm1710 = vcmp.ge.f32.partialorder %v1708, 0.0
    %v1711 = vmul.f32 %v1707, 0.2
    %v1712 = vmul.f32 %v1708, 0.2
    %v1713 = vsel %vm1709, %v1707, %v1711
    %v1714 = vsel %vm1710, %v1708, %v1712
    %v1715 = vadd.f32 %v1713, %v39
    %v1716 = vadd.f32 %v1714, %v40
    %v1717 = vsel %vm50, %v1715, -inf
    %1718 = vmax.xlane.f32.xlu0 %v1717
    %v1719 = vpop.xlane.xlu0 %1718
    %v1720 = vsel %vm50, %v1716, -inf
    %1721 = vmax.xlane.f32.xlu0 %v1720
    %v1722 = vpop.xlane.xlu0 %1721
    %v1723 = vsub.f32 %v1715, %v1719
    %v1724 = vsub.f32 %v1716, %v1722
    %v1725 = vmul.f32 %v1723, 1.442695
    %v1726 = vpow.pop %v1725
    %v1727 = vmul.f32 %v1724, 1.442695
    %v1728 = vpow.pop %v1727
    %v1729 = vsel %vm50, %v1726, 0.0
    %1730 = vadd.xlane.f32.xlu0 %v1729
    %v1731 = vpop.xlane.xlu0 %1730
    %v1732 = vsel %vm50, %v1728, 0.0
    %1733 = vadd.xlane.f32.xlu0 %v1732
    %v1734 = vpop.xlane.xlu0 %1733
    %v1735 = vrcp.pop %v1731
    %v1736 = vrcp.pop %v1734
    %v1737 = vmul.f32 %v1726, %v1735
    %v1738 = vmul.f32 %v1728, %v1736
    %v1740 = vlaneseq
    %v1741 = vshrl.u32 %v1740, 7
    %v1742 = vsub.s32 0, %v1741
    %v1743 = vrot.slane %v1509, %v1742
    %v1746 = vsel %vm50, %v1737, 0
    %v1749 = vsel %vm50, %v1738, 0
    %1751 = vmatprep.subr.mxu0 0.0
    %1752 = vmatpush1.msra.mxu0 0.0
    %1753 = vmatprep.subr.mxu0 0.0
    %1754 = vmatpush1.msra.mxu0 0.0
    %1755 = vmatprep.subr.mxu0 0.0
    %1756 = vmatpush1.msra.mxu0 0.0
    %1757 = vmatprep.subr.mxu0 0.0
    %1758 = vmatpush1.msra.mxu0 0.0
    %1759 = vmatprep.subr.mxu0 0.0
    %1760 = vmatpush1.msra.mxu0 0.0
    %1761 = vmatprep.subr.mxu0 0.0
    %1762 = vmatpush1.msra.mxu0 0.0
    %1763 = vmatprep.subr.mxu0 0.0
    %1764 = vmatpush1.msra.mxu0 0.0
    %1765 = vmatprep.subr.mxu0 0.0
    %1766 = vmatpush1.msra.mxu0 0.0
    %1767 = vmatprep.subr.mxu0 0.0
    %1768 = vmatpush1.msra.mxu0 0.0
    %1769 = vmatprep.subr.mxu0 0.0
    %1770 = vmatpush1.msra.mxu0 0.0
    %1771 = vmatprep.subr.mxu0 0.0
    %1772 = vmatpush1.msra.mxu0 0.0
    %1773 = vmatprep.subr.mxu0 0.0
    %1774 = vmatpush1.msra.mxu0 0.0
    %1775 = vmatprep.subr.mxu0 0.0
    %1776 = vmatpush1.msra.mxu0 0.0
    %1777 = vmatprep.subr.mxu0 0.0
    %1778 = vmatpush1.msra.mxu0 0.0
    %1779 = vmatprep.subr.mxu0 0.0
    %1780 = vmatpush1.msra.mxu0 %v1582
    %1781 = vmatprep.subr.mxu0 0.0
    %1782 = vmatpush1.msra.mxu0 %v1577
    %1783 = vmatprep.subr.mxu0 0.0
    %1784 = vmatpush2.msra.mxu0 0.0
    %1785 = vmatprep.subr.mxu0 0.0
    %1786 = vmatpush2.msra.mxu0 0.0
    %1787 = vmatprep.subr.mxu0 0.0
    %1788 = vmatpush2.msra.mxu0 0.0
    %1789 = vmatprep.subr.mxu0 0.0
    %1790 = vmatpush2.msra.mxu0 0.0
    %1791 = vmatprep.subr.mxu0 0.0
    %1792 = vmatpush2.msra.mxu0 0.0
    %1793 = vmatprep.subr.mxu0 0.0
    %1794 = vmatpush2.msra.mxu0 0.0
    %1795 = vmatprep.subr.mxu0 0.0
    %1796 = vmatpush2.msra.mxu0 0.0
    %1797 = vmatprep.subr.mxu0 0.0
    %1798 = vmatpush2.msra.mxu0 0.0
    %1799 = vmatprep.subr.mxu0 0.0
    %1800 = vmatpush2.msra.mxu0 0.0
    %1801 = vmatprep.subr.mxu0 0.0
    %1802 = vmatpush2.msra.mxu0 0.0
    %1803 = vmatprep.subr.mxu0 0.0
    %1804 = vmatpush2.msra.mxu0 0.0
    %1805 = vmatprep.subr.mxu0 0.0
    %1806 = vmatpush2.msra.mxu0 0.0
    %1807 = vmatprep.subr.mxu0 0.0
    %1808 = vmatpush2.msra.mxu0 0.0
    %1809 = vmatprep.subr.mxu0 0.0
    %1810 = vmatpush2.msra.mxu0 0.0
    %1811 = vmatprep.subr.mxu0 0.0
    %1812 = vmatpush2.msra.mxu0 0.0
    %1813 = vmatprep.subr.mxu0 0.0
    %1814 = vmatpush2.msra.mxu0 0.0
    %1815 = vmatprep.mubr.f32.mxu0 0.0
    %1816 = vmatmul.mubr.f32.gmra.mxu0 %v1746
    %v1817 = vpop.f32.mrf.mxu0
    %v1818 = vadd.f32 %v1743, %v1817
    %v1819 = vpop.f32.mrf.mxu0
    %1820 = vmatprep.mubr.f32.mxu0 0.0
    %1821 = vmatmul.mubr.f32.gmra.mxu0 %v1749
    %v1822 = vpop.f32.mrf.mxu0
    %v1823 = vadd.f32 %v1743, %v1822
    %v1824 = vpop.f32.mrf.mxu0
    %1825 = vdwg.mxu0
    %v1826 = vmax.f32 %v1818, 0.0
    %v1827 = vmax.f32 %v1823, 0.0
    %v1828 = vld [vmem:[%s8] sm:$0x3]
    %v1830 = vsel %vm50, %v1828, 0
    %1832 = vmatprep.subr.mxu0 0.0
    %1833 = vmatpush1.msra.mxu0 0.0
    %1834 = vmatprep.subr.mxu0 0.0
    %1835 = vmatpush1.msra.mxu0 0.0
    %1836 = vmatprep.subr.mxu0 0.0
    %1837 = vmatpush1.msra.mxu0 0.0
    %1838 = vmatprep.subr.mxu0 0.0
    %1839 = vmatpush1.msra.mxu0 0.0
    %1840 = vmatprep.subr.mxu0 0.0
    %1841 = vmatpush1.msra.mxu0 0.0
    %1842 = vmatprep.subr.mxu0 0.0
    %1843 = vmatpush1.msra.mxu0 0.0
    %1844 = vmatprep.subr.mxu0 0.0
    %1845 = vmatpush1.msra.mxu0 0.0
    %1846 = vmatprep.subr.mxu0 0.0
    %1847 = vmatpush1.msra.mxu0 0.0
    %1848 = vmatprep.subr.mxu0 0.0
    %1849 = vmatpush1.msra.mxu0 0.0
    %1850 = vmatprep.subr.mxu0 0.0
    %1851 = vmatpush1.msra.mxu0 0.0
    %1852 = vmatprep.subr.mxu0 0.0
    %1853 = vmatpush1.msra.mxu0 0.0
    %1854 = vmatprep.subr.mxu0 0.0
    %1855 = vmatpush1.msra.mxu0 0.0
    %1856 = vmatprep.subr.mxu0 0.0
    %1857 = vmatpush1.msra.mxu0 0.0
    %1858 = vmatprep.subr.mxu0 0.0
    %1859 = vmatpush1.msra.mxu0 0.0
    %1860 = vmatprep.subr.mxu0 0.0
    %1861 = vmatpush1.msra.mxu0 %v1827
    %1862 = vmatprep.subr.mxu0 0.0
    %1863 = vmatpush1.msra.mxu0 %v1826
    %1864 = vmatprep.subr.mxu0 0.0
    %1865 = vmatpush2.msra.mxu0 0.0
    %1866 = vmatprep.subr.mxu0 0.0
    %1867 = vmatpush2.msra.mxu0 0.0
    %1868 = vmatprep.subr.mxu0 0.0
    %1869 = vmatpush2.msra.mxu0 0.0
    %1870 = vmatprep.subr.mxu0 0.0
    %1871 = vmatpush2.msra.mxu0 0.0
    %1872 = vmatprep.subr.mxu0 0.0
    %1873 = vmatpush2.msra.mxu0 0.0
    %1874 = vmatprep.subr.mxu0 0.0
    %1875 = vmatpush2.msra.mxu0 0.0
    %1876 = vmatprep.subr.mxu0 0.0
    %1877 = vmatpush2.msra.mxu0 0.0
    %1878 = vmatprep.subr.mxu0 0.0
    %1879 = vmatpush2.msra.mxu0 0.0
    %1880 = vmatprep.subr.mxu0 0.0
    %1881 = vmatpush2.msra.mxu0 0.0
    %1882 = vmatprep.subr.mxu0 0.0
    %1883 = vmatpush2.msra.mxu0 0.0
    %1884 = vmatprep.subr.mxu0 0.0
    %1885 = vmatpush2.msra.mxu0 0.0
    %1886 = vmatprep.subr.mxu0 0.0
    %1887 = vmatpush2.msra.mxu0 0.0
    %1888 = vmatprep.subr.mxu0 0.0
    %1889 = vmatpush2.msra.mxu0 0.0
    %1890 = vmatprep.subr.mxu0 0.0
    %1891 = vmatpush2.msra.mxu0 0.0
    %1892 = vmatprep.subr.mxu0 0.0
    %1893 = vmatpush2.msra.mxu0 0.0
    %1894 = vmatprep.subr.mxu0 0.0
    %1895 = vmatpush2.msra.mxu0 0.0
    %1896 = vmatprep.mubr.f32.mxu0 0.0
    %1897 = vmatmul.mubr.f32.gmra.mxu0 %v1830
    %v1898 = vpop.f32.mrf.mxu0
    %v1899 = vadd.f32 0.0, %v1898
    %v1900 = vpop.f32.mrf.mxu0
    %1901 = vdwg.mxu0
    %vm1902 = vcmask 123904
    %v1903 = vsel %vm1902, %v1828, 0.0
    %1904 = vadd.xlane.f32.xlu0 %v1903
    %v1905 = vpop.xlane.xlu0 %1904
    %v1906 = vmax.f32 %v1905, 1.0
    %v1907 = vrcp.pop %v1906
    %v1908 = vmul.f32 %v1899, %v1907
    %v1909 = vld [vmem:[%s9] sm:$0xff]
    %v1910 = vld [vmem:[%s9 + $0x8] sm:$0xff]
    %v1911 = vld [vmem:[%s9 + $0x10] sm:$0xff]
    %v1912 = vld [vmem:[%s9 + $0x18] sm:$0xff]
    %v1913 = vld [vmem:[%s10] sm:$0x1]
    %v1915 = vlaneseq
    %v1916 = vshrl.u32 %v1915, 7
    %v1917 = vsub.s32 0, %v1916
    %v1918 = vrot.slane %v1913, %v1917
    %v1921 = vsel %vm1411, %v1908, 0
    %1923 = vmatprep.subr.mxu0 0.0
    %1924 = vmatpush1.msra.mxu0 0.0
    %1925 = vmatprep.subr.mxu0 0.0
    %1926 = vmatpush1.msra.mxu0 0.0
    %1927 = vmatprep.subr.mxu0 0.0
    %1928 = vmatpush1.msra.mxu0 0.0
    %1929 = vmatprep.subr.mxu0 0.0
    %1930 = vmatpush1.msra.mxu0 0.0
    %1931 = vmatprep.subr.mxu0 0.0
    %1932 = vmatpush1.msra.mxu0 0.0
    %1933 = vmatprep.subr.mxu0 0.0
    %1934 = vmatpush1.msra.mxu0 0.0
    %1935 = vmatprep.subr.mxu0 0.0
    %1936 = vmatpush1.msra.mxu0 0.0
    %1937 = vmatprep.subr.mxu0 0.0
    %1938 = vmatpush1.msra.mxu0 0.0
    %1939 = vmatprep.subr.mxu0 0.0
    %1940 = vmatpush1.msra.mxu0 0.0
    %1941 = vmatprep.subr.mxu0 0.0
    %1942 = vmatpush1.msra.mxu0 0.0
    %1943 = vmatprep.subr.mxu0 0.0
    %1944 = vmatpush1.msra.mxu0 0.0
    %1945 = vmatprep.subr.mxu0 0.0
    %1946 = vmatpush1.msra.mxu0 0.0
    %1947 = vmatprep.subr.mxu0 0.0
    %1948 = vmatpush1.msra.mxu0 %v1912
    %1949 = vmatprep.subr.mxu0 0.0
    %1950 = vmatpush1.msra.mxu0 %v1911
    %1951 = vmatprep.subr.mxu0 0.0
    %1952 = vmatpush1.msra.mxu0 %v1910
    %1953 = vmatprep.subr.mxu0 0.0
    %1954 = vmatpush1.msra.mxu0 %v1909
    %1955 = vmatprep.subr.mxu0 0.0
    %1956 = vmatpush2.msra.mxu0 0.0
    %1957 = vmatprep.subr.mxu0 0.0
    %1958 = vmatpush2.msra.mxu0 0.0
    %1959 = vmatprep.subr.mxu0 0.0
    %1960 = vmatpush2.msra.mxu0 0.0
    %1961 = vmatprep.subr.mxu0 0.0
    %1962 = vmatpush2.msra.mxu0 0.0
    %1963 = vmatprep.subr.mxu0 0.0
    %1964 = vmatpush2.msra.mxu0 0.0
    %1965 = vmatprep.subr.mxu0 0.0
    %1966 = vmatpush2.msra.mxu0 0.0
    %1967 = vmatprep.subr.mxu0 0.0
    %1968 = vmatpush2.msra.mxu0 0.0
    %1969 = vmatprep.subr.mxu0 0.0
    %1970 = vmatpush2.msra.mxu0 0.0
    %1971 = vmatprep.subr.mxu0 0.0
    %1972 = vmatpush2.msra.mxu0 0.0
    %1973 = vmatprep.subr.mxu0 0.0
    %1974 = vmatpush2.msra.mxu0 0.0
    %1975 = vmatprep.subr.mxu0 0.0
    %1976 = vmatpush2.msra.mxu0 0.0
    %1977 = vmatprep.subr.mxu0 0.0
    %1978 = vmatpush2.msra.mxu0 0.0
    %1979 = vmatprep.subr.mxu0 0.0
    %1980 = vmatpush2.msra.mxu0 0.0
    %1981 = vmatprep.subr.mxu0 0.0
    %1982 = vmatpush2.msra.mxu0 0.0
    %1983 = vmatprep.subr.mxu0 0.0
    %1984 = vmatpush2.msra.mxu0 0.0
    %1985 = vmatprep.subr.mxu0 0.0
    %1986 = vmatpush2.msra.mxu0 0.0
    %1987 = vmatprep.mubr.f32.mxu0 0.0
    %1988 = vmatmul.mubr.f32.gmra.mxu0 %v1921
    %v1989 = vpop.f32.mrf.mxu0
    %v1990 = vadd.f32 %v1918, %v1989
    %v1991 = vpop.f32.mrf.mxu0
    %1992 = vdwg.mxu0
    %vm1993 = vcmask 25600
    %v1994 = vsel %vm1993, %v1990, -inf
    %1995 = vmax.xlane.f32.xlu0 %v1994
    %v1996 = vpop.xlane.xlu0 %1995
    %v1997 = vsub.f32 %v1990, %v1996
    %v1998 = vmul.f32 %v1997, 1.442695
    %v1999 = vpow.pop %v1998
    %v2000 = vsel %vm1993, %v1999, 0.0
    %2001 = vadd.xlane.f32.xlu0 %v2000
    %v2002 = vpop.xlane.xlu0 %2001
    %v2003 = vlog2.pop %v2002
    %v2004 = vmul.f32 %v2003, 0.6931472
    %v2005 = vsub.f32 %v1997, %v2004
    %2006 = vst.msk [vmem:[#allocation2] sm:$0x3] %vm1993, %v2005
    // Predicated region
    $region46: #{tpu_custom_call.1} parent=1 // pred_check
      _
    $region47: #{tpu_custom_call.1} parent=1 // pred_check_branch
      %2008 = sbr.rel (0) target = $region49
    $region48: #{tpu_custom_call.1} parent=1 // pred_region
      %s2010 = ssub.s32 32, 32
      %2011 = vsyncadd [#allocation3], %s2010
      %s2013 = sshll.u32 [#allocation2], 4
      %s2014 = int_to_ptr.vmem [resolvable:$true] %s2013
      %2016 = dma.vmem_to_hbm [thread:$0]  %s2014, 32, %s11, [#allocation3]
    $region49: #{tpu_custom_call.1} parent=1 // pred_fallthru
      _
    // Predicated region
    $region50: #{tpu_custom_call.1} parent=1 // pred_check
      _
    $region51: #{tpu_custom_call.1} parent=1 // pred_check_branch
      %2018 = sbr.rel (0) target = $region53
    $region52: #{tpu_custom_call.1} parent=1 // pred_region
      %2019 = dma.done [#allocation3], 32
    $region53: #{tpu_custom_call.1} parent=1 // pred_fallthru
      _
    %2020 = vsyncpa [#allocation3], 1

</llo_original>
